<compile_context>
chip_gen: v7x
topology: tpu7x:2x2x1
jax: 0.10.0
libtpu: 0.0.40
codegen_flags: <defaults>
</compile_context>

<pallas_src>
import math

import jax
import jax.numpy as jnp
from jax.experimental import pallas as pl
from jax.experimental.pallas import tpu as pltpu

# ----------------------------- config (small) ------------------------------
VOCAB = 64       # vocab size
T_SEQ = 8        # sequence length
D_MODEL = 32     # hidden size
N_HEAD = 4       # attention heads
D_HEAD = D_MODEL // N_HEAD
N_LAYER = 2      # transformer blocks
D_FF = 4 * D_MODEL
LN_EPS = 1e-5


# ------------------------------ fused kernel --------------------------------
def _gpt2_fused_kernel(ids_ref, labels_ref, wte_ref, wpe_ref, ln_ref,
                       w_attn_ref, b_attn_ref, w_proj_ref, b_proj_ref,
                       w_fc_ref, b_fc_ref, w_mproj_ref, b_mproj_ref,
                       lnf_ref, loss_ref, x_scr):
    """grid axis 0 = transformer layer; x_scr carries the [T, D] activation."""
    layer = pl.program_id(0)
    last = pl.num_programs(0) - 1

    def layer_norm(x, g, b):
        mu = jnp.mean(x, axis=-1, keepdims=True)
        var = jnp.mean(jnp.square(x - mu), axis=-1, keepdims=True)
        return (x - mu) * jax.lax.rsqrt(var + LN_EPS) * g + b

    def mm(a, w):
        # bf16 MXU operands (v6e/v7x throughput + half the weight bytes),
        # f32 accumulation.  Elementwise math elsewhere stays f32 (v5e-safe).
        return jnp.dot(a.astype(jnp.bfloat16), w,
                       preferred_element_type=jnp.float32)

    # ---- embedding (first grid step only): one-hot matmul, stays in VMEM ----
    @pl.when(layer == 0)
    def _():
        ids = ids_ref[...]                                           # [T, 1] i32
        viota = jax.lax.broadcasted_iota(jnp.int32, (T_SEQ, VOCAB), 1)
        onehot = (viota == ids).astype(jnp.bfloat16)                 # [T, V]
        x_scr[...] = (jnp.dot(onehot, wte_ref[...],
                              preferred_element_type=jnp.float32)
                      + wpe_ref[...])

    x = x_scr[...]                                                   # [T, D] f32
    ln = ln_ref[0]                                                   # [4, D]

    # ------------------------- attention sub-block --------------------------
    h = layer_norm(x, ln[0:1, :], ln[1:2, :])
    qkv = mm(h, w_attn_ref[0]) + b_attn_ref[0]                       # [T, 3D] f32

    row = jax.lax.broadcasted_iota(jnp.int32, (T_SEQ, T_SEQ), 0)
    col = jax.lax.broadcasted_iota(jnp.int32, (T_SEQ, T_SEQ), 1)
    causal = col <= row
    scale = 1.0 / math.sqrt(D_HEAD)

    heads = []
    for hh in range(N_HEAD):  # static unroll; split/merge are VMEM lane slices
        q = qkv[:, hh * D_HEAD:(hh + 1) * D_HEAD]
        k = qkv[:, D_MODEL + hh * D_HEAD:D_MODEL + (hh + 1) * D_HEAD]
        v = qkv[:, 2 * D_MODEL + hh * D_HEAD:2 * D_MODEL + (hh + 1) * D_HEAD]
        s = jax.lax.dot_general(q, k, (((1,), (1,)), ((), ())),
                                preferred_element_type=jnp.float32) * scale
        s = jnp.where(causal, s, -jnp.inf)
        s = s - jnp.max(s, axis=-1, keepdims=True)
        p = jnp.exp(s)
        p = p / jnp.sum(p, axis=-1, keepdims=True)
        heads.append(jnp.dot(p, v, preferred_element_type=jnp.float32))
    a = jnp.concatenate(heads, axis=-1)                              # [T, D]
    x = x + mm(a, w_proj_ref[0]) + b_proj_ref[0]

    # ---------------------------- MLP sub-block ------------------------------
    h = layer_norm(x, ln[2:3, :], ln[3:4, :])
    m = mm(h, w_fc_ref[0]) + b_fc_ref[0]
    # GPT-2 "gelu_new" (tanh approximation), f32 on EUP/VPU.
    m = 0.5 * m * (1.0 + jnp.tanh(0.7978845608028654
                                  * (m + 0.044715 * m * m * m)))
    x = x + mm(m, w_mproj_ref[0]) + b_mproj_ref[0]

    x_scr[...] = x

    # ---- epilogue (last grid step): final LN + tied head + masked xent ------
    @pl.when(layer == last)
    def _():
        lnf = lnf_ref[...]
        xf = layer_norm(x, lnf[0:1, :], lnf[1:2, :])
        # Tied LM head: logits = xf @ wte.T  via contraction over the hidden
        # dim of the same wte ref (no transposed weight copy, no XLA transpose).
        # TODO(synk): at real GPT-2 scale (V=50257) the vocab axis must be
        # tiled here so logits never materialize whole; V=64 fits trivially.
        logits = jax.lax.dot_general(
            xf.astype(jnp.bfloat16), wte_ref[...],
            (((1,), (1,)), ((), ())),
            preferred_element_type=jnp.float32)                      # [T, V]

        mx = jnp.max(logits, axis=-1, keepdims=True)
        z = logits - mx
        lse = jnp.log(jnp.sum(jnp.exp(z), axis=-1, keepdims=True))
        logprob = z - lse                                            # [T, V]

        labels = labels_ref[...]          # [T, 1] i32, pre-shifted, -100 pad
        viota = jax.lax.broadcasted_iota(jnp.int32, (T_SEQ, VOCAB), 1)
        onehot = (viota == labels).astype(jnp.float32)               # [T, V]
        nll = -jnp.sum(onehot * logprob, axis=-1, keepdims=True)     # [T, 1]
        valid = (labels != -100).astype(jnp.float32)                 # [T, 1]
        num = jnp.sum(nll * valid, axis=0, keepdims=True)            # [1, 1]
        den = jnp.sum(valid, axis=0, keepdims=True)                  # [1, 1]
        loss_ref[...] = num / jnp.maximum(den, 1.0)                  # NaN guard


# ------------------------------- wrapper -------------------------------------
def cag_gpt_forward_loss(params, input_ids, labels):
    """GPT-2 LM forward + masked cross-entropy (== output.loss in torch)."""
    # HF loss shift (predict token t+1 at position t): fold it into the label
    # vector once (position T-1 padded with ignore_index) so logits are never
    # sliced off-tile between kernels.
    shifted = jnp.concatenate(
        [labels[1:], jnp.full((1,), -100, dtype=jnp.int32)]).reshape(T_SEQ, 1)

    const2 = lambda l: (0, 0)
    per_layer = lambda l: (l, 0, 0)

    loss = pl.pallas_call(
        _gpt2_fused_kernel,
        out_shape=jax.ShapeDtypeStruct((1, 1), jnp.float32),
        grid=(N_LAYER,),
        in_specs=[
            pl.BlockSpec((T_SEQ, 1), const2),                    # token ids
            pl.BlockSpec((T_SEQ, 1), const2),                    # shifted labels
            pl.BlockSpec((VOCAB, D_MODEL), const2),              # wte (tied head)
            pl.BlockSpec((T_SEQ, D_MODEL), const2),              # wpe
            pl.BlockSpec((1, 4, D_MODEL), per_layer),            # ln1/ln2 g,b
            pl.BlockSpec((1, D_MODEL, 3 * D_MODEL), per_layer),  # w_attn
            pl.BlockSpec((1, 1, 3 * D_MODEL), per_layer),        # b_attn
            pl.BlockSpec((1, D_MODEL, D_MODEL), per_layer),      # w_proj
            pl.BlockSpec((1, 1, D_MODEL), per_layer),            # b_proj
            pl.BlockSpec((1, D_MODEL, D_FF), per_layer),         # w_fc
            pl.BlockSpec((1, 1, D_FF), per_layer),               # b_fc
            pl.BlockSpec((1, D_FF, D_MODEL), per_layer),         # w_mproj
            pl.BlockSpec((1, 1, D_MODEL), per_layer),            # b_mproj
            pl.BlockSpec((2, D_MODEL), const2),                  # final LN g,b
        ],
        out_specs=pl.BlockSpec((1, 1), const2),
        scratch_shapes=[pltpu.VMEM((T_SEQ, D_MODEL), jnp.float32)],
        compiler_params=pltpu.CompilerParams(
            dimension_semantics=("arbitrary",)),   # layers are sequential
    )(
        input_ids.reshape(T_SEQ, 1).astype(jnp.int32),
        shifted,
        params["wte"], params["wpe"], params["ln"],
        params["w_attn"], params["b_attn"],
        params["w_proj"], params["b_proj"],
        params["w_fc"], params["b_fc"],
        params["w_mproj"], params["b_mproj"],
        params["lnf"],
    )
    return loss[0, 0]


# ---------------------------- parameters (synthetic) -------------------------
def init_params(key):
    def normal(k, shape, scale=0.02):
        return scale * jax.random.normal(k, shape, dtype=jnp.float32)

    keys = jax.random.split(key, 2 + 4 * N_LAYER)
    wte = normal(keys[0], (VOCAB, D_MODEL)).astype(jnp.bfloat16)   # bf16 in HBM
    wpe = normal(keys[1], (T_SEQ, D_MODEL))

    ln_unit = jnp.stack([jnp.ones(D_MODEL), jnp.zeros(D_MODEL),
                         jnp.ones(D_MODEL), jnp.zeros(D_MODEL)]).astype(jnp.float32)
    params = {
        "wte": wte,
        "wpe": wpe,
        "ln": jnp.tile(ln_unit[None], (N_LAYER, 1, 1)),            # [L,4,D]
        "lnf": jnp.stack([jnp.ones(D_MODEL, jnp.float32),
                          jnp.zeros(D_MODEL, jnp.float32)]),       # [2,D]
        "w_attn": jnp.stack([normal(keys[2 + 4 * l], (D_MODEL, 3 * D_MODEL))
                             for l in range(N_LAYER)]).astype(jnp.bfloat16),
        "b_attn": jnp.zeros((N_LAYER, 1, 3 * D_MODEL), jnp.float32),
        "w_proj": jnp.stack([normal(keys[3 + 4 * l], (D_MODEL, D_MODEL))
                             for l in range(N_LAYER)]).astype(jnp.bfloat16),
        "b_proj": jnp.zeros((N_LAYER, 1, D_MODEL), jnp.float32),
        "w_fc": jnp.stack([normal(keys[4 + 4 * l], (D_MODEL, D_FF))
                           for l in range(N_LAYER)]).astype(jnp.bfloat16),
        "b_fc": jnp.zeros((N_LAYER, 1, D_FF), jnp.float32),
        "w_mproj": jnp.stack([normal(keys[5 + 4 * l], (D_FF, D_MODEL))
                              for l in range(N_LAYER)]).astype(jnp.bfloat16),
        "b_mproj": jnp.zeros((N_LAYER, 1, D_MODEL), jnp.float32),
    }
    return params


# ------------------------- pure-JAX reference (f32) --------------------------
def _ln_ref(x, g, b):
    mu = jnp.mean(x, -1, keepdims=True)
    var = jnp.mean((x - mu) ** 2, -1, keepdims=True)
    return (x - mu) * jax.lax.rsqrt(var + LN_EPS) * g + b


def reference_loss(params, input_ids, labels):
    f32 = jnp.float32
    wte = params["wte"].astype(f32)
    x = wte[input_ids] + params["wpe"]
    mask = jnp.tril(jnp.ones((T_SEQ, T_SEQ), bool))
    for l in range(N_LAYER):
        g1, b1, g2, b2 = params["ln"][l]
        h = _ln_ref(x, g1, b1)
        qkv = h @ params["w_attn"][l].astype(f32) + params["b_attn"][l][0]
        q, k, v = jnp.split(qkv, 3, axis=-1)
        q = q.reshape(T_SEQ, N_HEAD, D_HEAD).transpose(1, 0, 2)
        k = k.reshape(T_SEQ, N_HEAD, D_HEAD).transpose(1, 0, 2)
        v = v.reshape(T_SEQ, N_HEAD, D_HEAD).transpose(1, 0, 2)
        s = jnp.einsum("htd,hsd->hts", q, k) / math.sqrt(D_HEAD)
        s = jnp.where(mask[None], s, -jnp.inf)
        p = jax.nn.softmax(s, axis=-1)
        a = jnp.einsum("hts,hsd->htd", p, v).transpose(1, 0, 2).reshape(T_SEQ, D_MODEL)
        x = x + a @ params["w_proj"][l].astype(f32) + params["b_proj"][l][0]
        h = _ln_ref(x, g2, b2)
        m = h @ params["w_fc"][l].astype(f32) + params["b_fc"][l][0]
        m = 0.5 * m * (1.0 + jnp.tanh(0.7978845608028654 * (m + 0.044715 * m ** 3)))
        x = x + m @ params["w_mproj"][l].astype(f32) + params["b_mproj"][l][0]
    xf = _ln_ref(x, params["lnf"][0], params["lnf"][1])
    logits = xf @ wte.T
    shift_logits = logits[:-1]
    shift_labels = labels[1:]
    logprob = jax.nn.log_softmax(shift_logits, axis=-1)
    valid = (shift_labels != -100).astype(f32)
    tgt = jnp.where(shift_labels != -100, shift_labels, 0)
    nll = -jnp.take_along_axis(logprob, tgt[:, None], axis=-1)[:, 0]
    return jnp.sum(nll * valid) / jnp.maximum(jnp.sum(valid), 1.0)


# --------------------------------- main --------------------------------------
if __name__ == "__main__":
    key = jax.random.PRNGKey(0)
    k_param, k_ids = jax.random.split(key)

    params = init_params(k_param)

    # Synthetic "tokenized prompt": prefix tokens (masked) + target tokens.
    input_ids = jax.random.randint(k_ids, (T_SEQ,), 0, VOCAB, dtype=jnp.int32)
    n_target = 3
    labels = jnp.concatenate(
        [jnp.full((T_SEQ - n_target,), -100, dtype=jnp.int32),
         input_ids[-n_target:]])

    loss_fn = jax.jit(cag_gpt_forward_loss)
    loss = loss_fn(params, input_ids, labels)
    jax.block_until_ready(loss)

    ref = reference_loss(params, input_ids, labels)
    assert loss.shape == () and bool(jnp.isfinite(loss))
    rel = abs(float(loss) - float(ref)) / max(1e-6, abs(float(ref)))
    assert rel < 2e-2, (float(loss), float(ref))
    print("KERNEL_OK")
</pallas_src>

<mosaic_0001>
module attributes {stable_mosaic.version = 11 : i64} {
  func.func @_gpt2_fused_kernel(%arg0: i32, %arg1: memref<8x1xi32, #tpu.memory_space<vmem>>, %arg2: memref<8x1xi32, #tpu.memory_space<vmem>>, %arg3: memref<64x32xbf16, #tpu.memory_space<vmem>>, %arg4: memref<8x32xf32, #tpu.memory_space<vmem>>, %arg5: memref<1x4x32xf32, #tpu.memory_space<vmem>>, %arg6: memref<1x32x96xbf16, #tpu.memory_space<vmem>>, %arg7: memref<1x1x96xf32, #tpu.memory_space<vmem>>, %arg8: memref<1x32x32xbf16, #tpu.memory_space<vmem>>, %arg9: memref<1x1x32xf32, #tpu.memory_space<vmem>>, %arg10: memref<1x32x128xbf16, #tpu.memory_space<vmem>>, %arg11: memref<1x1x128xf32, #tpu.memory_space<vmem>>, %arg12: memref<1x128x32xbf16, #tpu.memory_space<vmem>>, %arg13: memref<1x1x32xf32, #tpu.memory_space<vmem>>, %arg14: memref<2x32xf32, #tpu.memory_space<vmem>>, %arg15: memref<1x1xf32, #tpu.memory_space<vmem>>, %arg16: memref<8x32xf32, #tpu.memory_space<vmem>>) attributes {dimension_semantics = [#tpu.dimension_semantics<arbitrary>], iteration_bounds = array<i64: 2>, scalar_prefetch = 0 : i64, scratch_operands = 1 : i64, tpu.core_type = #tpu.core_type<tc>, window_params = [{pipeline_mode = #tpu.pipeline_mode<synchronous>, transform_indices = @transform_0, window_bounds = array<i64: 8, 1>}, {pipeline_mode = #tpu.pipeline_mode<synchronous>, transform_indices = @transform_1, window_bounds = array<i64: 8, 1>}, {pipeline_mode = #tpu.pipeline_mode<synchronous>, transform_indices = @transform_2, window_bounds = array<i64: 64, 32>}, {pipeline_mode = #tpu.pipeline_mode<synchronous>, transform_indices = @transform_3, window_bounds = array<i64: 8, 32>}, {transform_indices = @transform_4, window_bounds = array<i64: 1, 4, 32>}, {transform_indices = @transform_5, window_bounds = array<i64: 1, 32, 96>}, {transform_indices = @transform_6, window_bounds = array<i64: 1, 1, 96>}, {transform_indices = @transform_7, window_bounds = array<i64: 1, 32, 32>}, {transform_indices = @transform_8, window_bounds = array<i64: 1, 1, 32>}, {transform_indices = @transform_9, window_bounds = array<i64: 1, 32, 128>}, {transform_indices = @transform_10, window_bounds = array<i64: 1, 1, 128>}, {transform_indices = @transform_11, window_bounds = array<i64: 1, 128, 32>}, {transform_indices = @transform_12, window_bounds = array<i64: 1, 1, 32>}, {pipeline_mode = #tpu.pipeline_mode<synchronous>, transform_indices = @transform_13, window_bounds = array<i64: 2, 32>}, {pipeline_mode = #tpu.pipeline_mode<synchronous>, transform_indices = @transform_14, window_bounds = array<i64: 1, 1>}]} {
    %c0_i32 = arith.constant 0 : i32
    %0 = arith.cmpi eq, %arg0, %c0_i32 : i32
    %1 = arith.extui %0 : i1 to i32
    %c0_i32_0 = arith.constant 0 : i32
    %2 = arith.cmpi ne, %1, %c0_i32_0 : i32
    scf.if %2 {
      %c0_73 = arith.constant 0 : index
      %c0_74 = arith.constant 0 : index
      %181 = vector.load %arg1[%c0_73, %c0_74] : memref<8x1xi32, #tpu.memory_space<vmem>>, vector<8x1xi32>
      %182 = tpu.iota {dimensions = array<i32: 1>} : vector<8x64xi32>
      %183 = vector.broadcast %181 : vector<8x1xi32> to vector<8x64xi32>
      %184 = arith.cmpi eq, %182, %183 : vector<8x64xi32>
      %185 = arith.extui %184 : vector<8x64xi1> to vector<8x64xi32>
      %186 = arith.sitofp %185 : vector<8x64xi32> to vector<8x64xf32>
      %187 = arith.truncf %186 : vector<8x64xf32> to vector<8x64xbf16>
      %c0_75 = arith.constant 0 : index
      %c0_76 = arith.constant 0 : index
      %188 = vector.load %arg3[%c0_75, %c0_76] : memref<64x32xbf16, #tpu.memory_space<vmem>>, vector<64x32xbf16>
      %cst_77 = arith.constant dense<0.000000e+00> : vector<8x32xf32>
      %189 = tpu.matmul %187, %188, %cst_77 {dimension_numbers = #tpu.dot_dimension_numbers<[1], [0], [0], [1], [0, 0, 1, 1], [], []>} : vector<8x64xbf16>, vector<64x32xbf16>, vector<8x32xf32> -> vector<8x32xf32>
      %c0_78 = arith.constant 0 : index
      %c0_79 = arith.constant 0 : index
      %190 = vector.load %arg4[%c0_78, %c0_79] : memref<8x32xf32, #tpu.memory_space<vmem>>, vector<8x32xf32>
      %191 = arith.addf %189, %190 : vector<8x32xf32>
      %c0_80 = arith.constant 0 : index
      %c0_81 = arith.constant 0 : index
      %192 = vector.load %arg16[%c0_80, %c0_81] : memref<8x32xf32, #tpu.memory_space<vmem>>, vector<8x32xf32>
      tpu.vector_store %arg16[%c0_80, %c0_81], %191 {strides = array<i32>} : memref<8x32xf32, #tpu.memory_space<vmem>>, vector<8x32xf32>,
    } else {
    }
    %c0 = arith.constant 0 : index
    %c0_1 = arith.constant 0 : index
    %3 = vector.load %arg16[%c0, %c0_1] : memref<8x32xf32, #tpu.memory_space<vmem>>, vector<8x32xf32>
    %c0_2 = arith.constant 0 : index
    %c0_3 = arith.constant 0 : index
    %c0_4 = arith.constant 0 : index
    %4 = vector.load %arg5[%c0_2, %c0_3, %c0_4] : memref<1x4x32xf32, #tpu.memory_space<vmem>>, vector<1x4x32xf32>
    %5 = vector.shape_cast %4 : vector<1x4x32xf32> to vector<4x32xf32>
    %6 = vector.extract_strided_slice %5 {offsets = [0, 0], sizes = [1, 32], strides = [1, 1]} : vector<4x32xf32> to vector<1x32xf32>
    %7 = vector.extract_strided_slice %5 {offsets = [1, 0], sizes = [1, 32], strides = [1, 1]} : vector<4x32xf32> to vector<1x32xf32>
    %cst = arith.constant dense<0.000000e+00> : vector<8xf32>
    %8 = vector.multi_reduction <add>, %3, %cst [1] : vector<8x32xf32> to vector<8xf32>
    %9 = vector.shape_cast %8 : vector<8xf32> to vector<8x1xf32>
    %cst_5 = arith.constant 3.200000e+01 : f32
    %10 = vector.broadcast %cst_5 : f32 to vector<8x1xf32>
    %11 = arith.divf %9, %10 : vector<8x1xf32>
    %12 = vector.broadcast %11 : vector<8x1xf32> to vector<8x32xf32>
    %13 = arith.subf %3, %12 : vector<8x32xf32>
    %14 = arith.mulf %13, %13 : vector<8x32xf32>
    %cst_6 = arith.constant dense<0.000000e+00> : vector<8xf32>
    %15 = vector.multi_reduction <add>, %14, %cst_6 [1] : vector<8x32xf32> to vector<8xf32>
    %16 = vector.shape_cast %15 : vector<8xf32> to vector<8x1xf32>
    %cst_7 = arith.constant 3.200000e+01 : f32
    %17 = vector.broadcast %cst_7 : f32 to vector<8x1xf32>
    %18 = arith.divf %16, %17 : vector<8x1xf32>
    %19 = vector.broadcast %11 : vector<8x1xf32> to vector<8x32xf32>
    %20 = arith.subf %3, %19 : vector<8x32xf32>
    %cst_8 = arith.constant 9.99999974E-6 : f32
    %21 = vector.broadcast %cst_8 : f32 to vector<8x1xf32>
    %22 = arith.addf %18, %21 : vector<8x1xf32>
    %23 = math.rsqrt %22 : vector<8x1xf32>
    %24 = vector.broadcast %23 : vector<8x1xf32> to vector<8x32xf32>
    %25 = arith.mulf %20, %24 : vector<8x32xf32>
    %26 = vector.broadcast %6 : vector<1x32xf32> to vector<8x32xf32>
    %27 = arith.mulf %25, %26 : vector<8x32xf32>
    %28 = vector.broadcast %7 : vector<1x32xf32> to vector<8x32xf32>
    %29 = arith.addf %27, %28 : vector<8x32xf32>
    %c0_9 = arith.constant 0 : index
    %c0_10 = arith.constant 0 : index
    %c0_11 = arith.constant 0 : index
    %30 = vector.load %arg6[%c0_9, %c0_10, %c0_11] : memref<1x32x96xbf16, #tpu.memory_space<vmem>>, vector<1x32x96xbf16>
    %31 = vector.shape_cast %30 : vector<1x32x96xbf16> to vector<32x96xbf16>
    %32 = arith.truncf %29 : vector<8x32xf32> to vector<8x32xbf16>
    %cst_12 = arith.constant dense<0.000000e+00> : vector<8x96xf32>
    %33 = tpu.matmul %32, %31, %cst_12 {dimension_numbers = #tpu.dot_dimension_numbers<[1], [0], [0], [1], [0, 0, 1, 1], [], []>} : vector<8x32xbf16>, vector<32x96xbf16>, vector<8x96xf32> -> vector<8x96xf32>
    %c0_13 = arith.constant 0 : index
    %c0_14 = arith.constant 0 : index
    %c0_15 = arith.constant 0 : index
    %34 = vector.load %arg7[%c0_13, %c0_14, %c0_15] : memref<1x1x96xf32, #tpu.memory_space<vmem>>, vector<1x1x96xf32>
    %35 = vector.shape_cast %34 : vector<1x1x96xf32> to vector<1x96xf32>
    %36 = vector.broadcast %35 : vector<1x96xf32> to vector<8x96xf32>
    %37 = arith.addf %33, %36 : vector<8x96xf32>
    %38 = tpu.iota {dimensions = array<i32: 0>} : vector<8x8xi32>
    %39 = tpu.iota {dimensions = array<i32: 1>} : vector<8x8xi32>
    %40 = arith.cmpi sle, %39, %38 : vector<8x8xi32>
    %41 = vector.extract_strided_slice %37 {offsets = [0, 0], sizes = [8, 8], strides = [1, 1]} : vector<8x96xf32> to vector<8x8xf32>
    %42 = vector.extract_strided_slice %37 {offsets = [0, 32], sizes = [8, 8], strides = [1, 1]} : vector<8x96xf32> to vector<8x8xf32>
    %43 = vector.extract_strided_slice %37 {offsets = [0, 64], sizes = [8, 8], strides = [1, 1]} : vector<8x96xf32> to vector<8x8xf32>
    %cst_16 = arith.constant dense<0.000000e+00> : vector<8x8xf32>
    %44 = tpu.matmul %41, %42, %cst_16 {dimension_numbers = #tpu.dot_dimension_numbers<[1], [1], [0], [0], [0, 0, 1, 0], [], []>} : vector<8x8xf32>, vector<8x8xf32>, vector<8x8xf32> -> vector<8x8xf32>
    %cst_17 = arith.constant 0.353553385 : f32
    %45 = vector.broadcast %cst_17 : f32 to vector<8x8xf32>
    %46 = arith.mulf %44, %45 : vector<8x8xf32>
    %cst_18 = arith.constant 0xFF800000 : f32
    %47 = vector.broadcast %cst_18 : f32 to vector<8x8xf32>
    %48 = arith.select %40, %46, %47 : vector<8x8xi1>, vector<8x8xf32>
    %cst_19 = arith.constant dense<0xFF800000> : vector<8xf32>
    %49 = vector.multi_reduction <maximumf>, %48, %cst_19 [1] : vector<8x8xf32> to vector<8xf32>
    %50 = vector.shape_cast %49 : vector<8xf32> to vector<8x1xf32>
    %51 = vector.broadcast %50 : vector<8x1xf32> to vector<8x8xf32>
    %52 = arith.subf %48, %51 : vector<8x8xf32>
    %53 = math.exp %52 : vector<8x8xf32>
    %cst_20 = arith.constant dense<0.000000e+00> : vector<8xf32>
    %54 = vector.multi_reduction <add>, %53, %cst_20 [1] : vector<8x8xf32> to vector<8xf32>
    %55 = vector.shape_cast %54 : vector<8xf32> to vector<8x1xf32>
    %56 = vector.broadcast %55 : vector<8x1xf32> to vector<8x8xf32>
    %57 = arith.divf %53, %56 : vector<8x8xf32>
    %cst_21 = arith.constant dense<0.000000e+00> : vector<8x8xf32>
    %58 = tpu.matmul %57, %43, %cst_21 {dimension_numbers = #tpu.dot_dimension_numbers<[1], [0], [0], [1], [0, 0, 1, 1], [], []>} : vector<8x8xf32>, vector<8x8xf32>, vector<8x8xf32> -> vector<8x8xf32>
    %59 = vector.extract_strided_slice %37 {offsets = [0, 8], sizes = [8, 8], strides = [1, 1]} : vector<8x96xf32> to vector<8x8xf32>
    %60 = vector.extract_strided_slice %37 {offsets = [0, 40], sizes = [8, 8], strides = [1, 1]} : vector<8x96xf32> to vector<8x8xf32>
    %61 = vector.extract_strided_slice %37 {offsets = [0, 72], sizes = [8, 8], strides = [1, 1]} : vector<8x96xf32> to vector<8x8xf32>
    %cst_22 = arith.constant dense<0.000000e+00> : vector<8x8xf32>
    %62 = tpu.matmul %59, %60, %cst_22 {dimension_numbers = #tpu.dot_dimension_numbers<[1], [1], [0], [0], [0, 0, 1, 0], [], []>} : vector<8x8xf32>, vector<8x8xf32>, vector<8x8xf32> -> vector<8x8xf32>
    %cst_23 = arith.constant 0.353553385 : f32
    %63 = vector.broadcast %cst_23 : f32 to vector<8x8xf32>
    %64 = arith.mulf %62, %63 : vector<8x8xf32>
    %cst_24 = arith.constant 0xFF800000 : f32
    %65 = vector.broadcast %cst_24 : f32 to vector<8x8xf32>
    %66 = arith.select %40, %64, %65 : vector<8x8xi1>, vector<8x8xf32>
    %cst_25 = arith.constant dense<0xFF800000> : vector<8xf32>
    %67 = vector.multi_reduction <maximumf>, %66, %cst_25 [1] : vector<8x8xf32> to vector<8xf32>
    %68 = vector.shape_cast %67 : vector<8xf32> to vector<8x1xf32>
    %69 = vector.broadcast %68 : vector<8x1xf32> to vector<8x8xf32>
    %70 = arith.subf %66, %69 : vector<8x8xf32>
    %71 = math.exp %70 : vector<8x8xf32>
    %cst_26 = arith.constant dense<0.000000e+00> : vector<8xf32>
    %72 = vector.multi_reduction <add>, %71, %cst_26 [1] : vector<8x8xf32> to vector<8xf32>
    %73 = vector.shape_cast %72 : vector<8xf32> to vector<8x1xf32>
    %74 = vector.broadcast %73 : vector<8x1xf32> to vector<8x8xf32>
    %75 = arith.divf %71, %74 : vector<8x8xf32>
    %cst_27 = arith.constant dense<0.000000e+00> : vector<8x8xf32>
    %76 = tpu.matmul %75, %61, %cst_27 {dimension_numbers = #tpu.dot_dimension_numbers<[1], [0], [0], [1], [0, 0, 1, 1], [], []>} : vector<8x8xf32>, vector<8x8xf32>, vector<8x8xf32> -> vector<8x8xf32>
    %77 = vector.extract_strided_slice %37 {offsets = [0, 16], sizes = [8, 8], strides = [1, 1]} : vector<8x96xf32> to vector<8x8xf32>
    %78 = vector.extract_strided_slice %37 {offsets = [0, 48], sizes = [8, 8], strides = [1, 1]} : vector<8x96xf32> to vector<8x8xf32>
    %79 = vector.extract_strided_slice %37 {offsets = [0, 80], sizes = [8, 8], strides = [1, 1]} : vector<8x96xf32> to vector<8x8xf32>
    %cst_28 = arith.constant dense<0.000000e+00> : vector<8x8xf32>
    %80 = tpu.matmul %77, %78, %cst_28 {dimension_numbers = #tpu.dot_dimension_numbers<[1], [1], [0], [0], [0, 0, 1, 0], [], []>} : vector<8x8xf32>, vector<8x8xf32>, vector<8x8xf32> -> vector<8x8xf32>
    %cst_29 = arith.constant 0.353553385 : f32
    %81 = vector.broadcast %cst_29 : f32 to vector<8x8xf32>
    %82 = arith.mulf %80, %81 : vector<8x8xf32>
    %cst_30 = arith.constant 0xFF800000 : f32
    %83 = vector.broadcast %cst_30 : f32 to vector<8x8xf32>
    %84 = arith.select %40, %82, %83 : vector<8x8xi1>, vector<8x8xf32>
    %cst_31 = arith.constant dense<0xFF800000> : vector<8xf32>
    %85 = vector.multi_reduction <maximumf>, %84, %cst_31 [1] : vector<8x8xf32> to vector<8xf32>
    %86 = vector.shape_cast %85 : vector<8xf32> to vector<8x1xf32>
    %87 = vector.broadcast %86 : vector<8x1xf32> to vector<8x8xf32>
    %88 = arith.subf %84, %87 : vector<8x8xf32>
    %89 = math.exp %88 : vector<8x8xf32>
    %cst_32 = arith.constant dense<0.000000e+00> : vector<8xf32>
    %90 = vector.multi_reduction <add>, %89, %cst_32 [1] : vector<8x8xf32> to vector<8xf32>
    %91 = vector.shape_cast %90 : vector<8xf32> to vector<8x1xf32>
    %92 = vector.broadcast %91 : vector<8x1xf32> to vector<8x8xf32>
    %93 = arith.divf %89, %92 : vector<8x8xf32>
    %cst_33 = arith.constant dense<0.000000e+00> : vector<8x8xf32>
    %94 = tpu.matmul %93, %79, %cst_33 {dimension_numbers = #tpu.dot_dimension_numbers<[1], [0], [0], [1], [0, 0, 1, 1], [], []>} : vector<8x8xf32>, vector<8x8xf32>, vector<8x8xf32> -> vector<8x8xf32>
    %95 = vector.extract_strided_slice %37 {offsets = [0, 24], sizes = [8, 8], strides = [1, 1]} : vector<8x96xf32> to vector<8x8xf32>
    %96 = vector.extract_strided_slice %37 {offsets = [0, 56], sizes = [8, 8], strides = [1, 1]} : vector<8x96xf32> to vector<8x8xf32>
    %97 = vector.extract_strided_slice %37 {offsets = [0, 88], sizes = [8, 8], strides = [1, 1]} : vector<8x96xf32> to vector<8x8xf32>
    %cst_34 = arith.constant dense<0.000000e+00> : vector<8x8xf32>
    %98 = tpu.matmul %95, %96, %cst_34 {dimension_numbers = #tpu.dot_dimension_numbers<[1], [1], [0], [0], [0, 0, 1, 0], [], []>} : vector<8x8xf32>, vector<8x8xf32>, vector<8x8xf32> -> vector<8x8xf32>
    %cst_35 = arith.constant 0.353553385 : f32
    %99 = vector.broadcast %cst_35 : f32 to vector<8x8xf32>
    %100 = arith.mulf %98, %99 : vector<8x8xf32>
    %cst_36 = arith.constant 0xFF800000 : f32
    %101 = vector.broadcast %cst_36 : f32 to vector<8x8xf32>
    %102 = arith.select %40, %100, %101 : vector<8x8xi1>, vector<8x8xf32>
    %cst_37 = arith.constant dense<0xFF800000> : vector<8xf32>
    %103 = vector.multi_reduction <maximumf>, %102, %cst_37 [1] : vector<8x8xf32> to vector<8xf32>
    %104 = vector.shape_cast %103 : vector<8xf32> to vector<8x1xf32>
    %105 = vector.broadcast %104 : vector<8x1xf32> to vector<8x8xf32>
    %106 = arith.subf %102, %105 : vector<8x8xf32>
    %107 = math.exp %106 : vector<8x8xf32>
    %cst_38 = arith.constant dense<0.000000e+00> : vector<8xf32>
    %108 = vector.multi_reduction <add>, %107, %cst_38 [1] : vector<8x8xf32> to vector<8xf32>
    %109 = vector.shape_cast %108 : vector<8xf32> to vector<8x1xf32>
    %110 = vector.broadcast %109 : vector<8x1xf32> to vector<8x8xf32>
    %111 = arith.divf %107, %110 : vector<8x8xf32>
    %cst_39 = arith.constant dense<0.000000e+00> : vector<8x8xf32>
    %112 = tpu.matmul %111, %97, %cst_39 {dimension_numbers = #tpu.dot_dimension_numbers<[1], [0], [0], [1], [0, 0, 1, 1], [], []>} : vector<8x8xf32>, vector<8x8xf32>, vector<8x8xf32> -> vector<8x8xf32>
    %113 = tpu.concatenate %58, %76, %94, %112 in 1 : vector<8x8xf32>, vector<8x8xf32>, vector<8x8xf32>, vector<8x8xf32> -> vector<8x32xf32>
    %c0_40 = arith.constant 0 : index
    %c0_41 = arith.constant 0 : index
    %c0_42 = arith.constant 0 : index
    %114 = vector.load %arg8[%c0_40, %c0_41, %c0_42] : memref<1x32x32xbf16, #tpu.memory_space<vmem>>, vector<1x32x32xbf16>
    %115 = vector.shape_cast %114 : vector<1x32x32xbf16> to vector<32x32xbf16>
    %116 = arith.truncf %113 : vector<8x32xf32> to vector<8x32xbf16>
    %cst_43 = arith.constant dense<0.000000e+00> : vector<8x32xf32>
    %117 = tpu.matmul %116, %115, %cst_43 {dimension_numbers = #tpu.dot_dimension_numbers<[1], [0], [0], [1], [0, 0, 1, 1], [], []>} : vector<8x32xbf16>, vector<32x32xbf16>, vector<8x32xf32> -> vector<8x32xf32>
    %118 = arith.addf %3, %117 : vector<8x32xf32>
    %c0_44 = arith.constant 0 : index
    %c0_45 = arith.constant 0 : index
    %c0_46 = arith.constant 0 : index
    %119 = vector.load %arg9[%c0_44, %c0_45, %c0_46] : memref<1x1x32xf32, #tpu.memory_space<vmem>>, vector<1x1x32xf32>
    %120 = vector.shape_cast %119 : vector<1x1x32xf32> to vector<1x32xf32>
    %121 = vector.broadcast %120 : vector<1x32xf32> to vector<8x32xf32>
    %122 = arith.addf %118, %121 : vector<8x32xf32>
    %123 = vector.extract_strided_slice %5 {offsets = [2, 0], sizes = [1, 32], strides = [1, 1]} : vector<4x32xf32> to vector<1x32xf32>
    %124 = vector.extract_strided_slice %5 {offsets = [3, 0], sizes = [1, 32], strides = [1, 1]} : vector<4x32xf32> to vector<1x32xf32>
    %cst_47 = arith.constant dense<0.000000e+00> : vector<8xf32>
    %125 = vector.multi_reduction <add>, %122, %cst_47 [1] : vector<8x32xf32> to vector<8xf32>
    %126 = vector.shape_cast %125 : vector<8xf32> to vector<8x1xf32>
    %cst_48 = arith.constant 3.200000e+01 : f32
    %127 = vector.broadcast %cst_48 : f32 to vector<8x1xf32>
    %128 = arith.divf %126, %127 : vector<8x1xf32>
    %129 = vector.broadcast %128 : vector<8x1xf32> to vector<8x32xf32>
    %130 = arith.subf %122, %129 : vector<8x32xf32>
    %131 = arith.mulf %130, %130 : vector<8x32xf32>
    %cst_49 = arith.constant dense<0.000000e+00> : vector<8xf32>
    %132 = vector.multi_reduction <add>, %131, %cst_49 [1] : vector<8x32xf32> to vector<8xf32>
    %133 = vector.shape_cast %132 : vector<8xf32> to vector<8x1xf32>
    %cst_50 = arith.constant 3.200000e+01 : f32
    %134 = vector.broadcast %cst_50 : f32 to vector<8x1xf32>
    %135 = arith.divf %133, %134 : vector<8x1xf32>
    %136 = vector.broadcast %128 : vector<8x1xf32> to vector<8x32xf32>
    %137 = arith.subf %122, %136 : vector<8x32xf32>
    %cst_51 = arith.constant 9.99999974E-6 : f32
    %138 = vector.broadcast %cst_51 : f32 to vector<8x1xf32>
    %139 = arith.addf %135, %138 : vector<8x1xf32>
    %140 = math.rsqrt %139 : vector<8x1xf32>
    %141 = vector.broadcast %140 : vector<8x1xf32> to vector<8x32xf32>
    %142 = arith.mulf %137, %141 : vector<8x32xf32>
    %143 = vector.broadcast %123 : vector<1x32xf32> to vector<8x32xf32>
    %144 = arith.mulf %142, %143 : vector<8x32xf32>
    %145 = vector.broadcast %124 : vector<1x32xf32> to vector<8x32xf32>
    %146 = arith.addf %144, %145 : vector<8x32xf32>
    %c0_52 = arith.constant 0 : index
    %c0_53 = arith.constant 0 : index
    %c0_54 = arith.constant 0 : index
    %147 = vector.load %arg10[%c0_52, %c0_53, %c0_54] : memref<1x32x128xbf16, #tpu.memory_space<vmem>>, vector<1x32x128xbf16>
    %148 = vector.shape_cast %147 : vector<1x32x128xbf16> to vector<32x128xbf16>
    %149 = arith.truncf %146 : vector<8x32xf32> to vector<8x32xbf16>
    %cst_55 = arith.constant dense<0.000000e+00> : vector<8x128xf32>
    %150 = tpu.matmul %149, %148, %cst_55 {dimension_numbers = #tpu.dot_dimension_numbers<[1], [0], [0], [1], [0, 0, 1, 1], [], []>} : vector<8x32xbf16>, vector<32x128xbf16>, vector<8x128xf32> -> vector<8x128xf32>
    %c0_56 = arith.constant 0 : index
    %c0_57 = arith.constant 0 : index
    %c0_58 = arith.constant 0 : index
    %151 = vector.load %arg11[%c0_56, %c0_57, %c0_58] : memref<1x1x128xf32, #tpu.memory_space<vmem>>, vector<1x1x128xf32>
    %152 = vector.shape_cast %151 : vector<1x1x128xf32> to vector<1x128xf32>
    %153 = vector.broadcast %152 : vector<1x128xf32> to vector<8x128xf32>
    %154 = arith.addf %150, %153 : vector<8x128xf32>
    %cst_59 = arith.constant 5.000000e-01 : f32
    %155 = vector.broadcast %cst_59 : f32 to vector<8x128xf32>
    %156 = arith.mulf %155, %154 : vector<8x128xf32>
    %cst_60 = arith.constant 4.471500e-02 : f32
    %157 = vector.broadcast %cst_60 : f32 to vector<8x128xf32>
    %158 = arith.mulf %157, %154 : vector<8x128xf32>
    %159 = arith.mulf %158, %154 : vector<8x128xf32>
    %160 = arith.mulf %159, %154 : vector<8x128xf32>
    %161 = arith.addf %154, %160 : vector<8x128xf32>
    %cst_61 = arith.constant 0.797884583 : f32
    %162 = vector.broadcast %cst_61 : f32 to vector<8x128xf32>
    %163 = arith.mulf %162, %161 : vector<8x128xf32>
    %164 = math.tanh %163 : vector<8x128xf32>
    %cst_62 = arith.constant 1.000000e+00 : f32
    %165 = vector.broadcast %cst_62 : f32 to vector<8x128xf32>
    %166 = arith.addf %165, %164 : vector<8x128xf32>
    %167 = arith.mulf %156, %166 : vector<8x128xf32>
    %c0_63 = arith.constant 0 : index
    %c0_64 = arith.constant 0 : index
    %c0_65 = arith.constant 0 : index
    %168 = vector.load %arg12[%c0_63, %c0_64, %c0_65] : memref<1x128x32xbf16, #tpu.memory_space<vmem>>, vector<1x128x32xbf16>
    %169 = vector.shape_cast %168 : vector<1x128x32xbf16> to vector<128x32xbf16>
    %170 = arith.truncf %167 : vector<8x128xf32> to vector<8x128xbf16>
    %cst_66 = arith.constant dense<0.000000e+00> : vector<8x32xf32>
    %171 = tpu.matmul %170, %169, %cst_66 {dimension_numbers = #tpu.dot_dimension_numbers<[1], [0], [0], [1], [0, 0, 1, 1], [], []>} : vector<8x128xbf16>, vector<128x32xbf16>, vector<8x32xf32> -> vector<8x32xf32>
    %172 = arith.addf %122, %171 : vector<8x32xf32>
    %c0_67 = arith.constant 0 : index
    %c0_68 = arith.constant 0 : index
    %c0_69 = arith.constant 0 : index
    %173 = vector.load %arg13[%c0_67, %c0_68, %c0_69] : memref<1x1x32xf32, #tpu.memory_space<vmem>>, vector<1x1x32xf32>
    %174 = vector.shape_cast %173 : vector<1x1x32xf32> to vector<1x32xf32>
    %175 = vector.broadcast %174 : vector<1x32xf32> to vector<8x32xf32>
    %176 = arith.addf %172, %175 : vector<8x32xf32>
    %c0_70 = arith.constant 0 : index
    %c0_71 = arith.constant 0 : index
    %177 = vector.load %arg16[%c0_70, %c0_71] : memref<8x32xf32, #tpu.memory_space<vmem>>, vector<8x32xf32>
    tpu.vector_store %arg16[%c0_70, %c0_71], %176 {strides = array<i32>} : memref<8x32xf32, #tpu.memory_space<vmem>>, vector<8x32xf32>,
    %c1_i32 = arith.constant 1 : i32
    %178 = arith.cmpi eq, %arg0, %c1_i32 : i32
    %179 = arith.extui %178 : i1 to i32
    %c0_i32_72 = arith.constant 0 : i32
    %180 = arith.cmpi ne, %179, %c0_i32_72 : i32
    scf.if %180 {
      %c0_73 = arith.constant 0 : index
      %c0_74 = arith.constant 0 : index
      %181 = vector.load %arg14[%c0_73, %c0_74] : memref<2x32xf32, #tpu.memory_space<vmem>>, vector<2x32xf32>
      %182 = vector.extract_strided_slice %181 {offsets = [0, 0], sizes = [1, 32], strides = [1, 1]} : vector<2x32xf32> to vector<1x32xf32>
      %183 = vector.extract_strided_slice %181 {offsets = [1, 0], sizes = [1, 32], strides = [1, 1]} : vector<2x32xf32> to vector<1x32xf32>
      %cst_75 = arith.constant dense<0.000000e+00> : vector<8xf32>
      %184 = vector.multi_reduction <add>, %176, %cst_75 [1] : vector<8x32xf32> to vector<8xf32>
      %185 = vector.shape_cast %184 : vector<8xf32> to vector<8x1xf32>
      %cst_76 = arith.constant 3.200000e+01 : f32
      %186 = vector.broadcast %cst_76 : f32 to vector<8x1xf32>
      %187 = arith.divf %185, %186 : vector<8x1xf32>
      %188 = vector.broadcast %187 : vector<8x1xf32> to vector<8x32xf32>
      %189 = arith.subf %176, %188 : vector<8x32xf32>
      %190 = arith.mulf %189, %189 : vector<8x32xf32>
      %cst_77 = arith.constant dense<0.000000e+00> : vector<8xf32>
      %191 = vector.multi_reduction <add>, %190, %cst_77 [1] : vector<8x32xf32> to vector<8xf32>
      %192 = vector.shape_cast %191 : vector<8xf32> to vector<8x1xf32>
      %cst_78 = arith.constant 3.200000e+01 : f32
      %193 = vector.broadcast %cst_78 : f32 to vector<8x1xf32>
      %194 = arith.divf %192, %193 : vector<8x1xf32>
      %195 = vector.broadcast %187 : vector<8x1xf32> to vector<8x32xf32>
      %196 = arith.subf %176, %195 : vector<8x32xf32>
      %cst_79 = arith.constant 9.99999974E-6 : f32
      %197 = vector.broadcast %cst_79 : f32 to vector<8x1xf32>
      %198 = arith.addf %194, %197 : vector<8x1xf32>
      %199 = math.rsqrt %198 : vector<8x1xf32>
      %200 = vector.broadcast %199 : vector<8x1xf32> to vector<8x32xf32>
      %201 = arith.mulf %196, %200 : vector<8x32xf32>
      %202 = vector.broadcast %182 : vector<1x32xf32> to vector<8x32xf32>
      %203 = arith.mulf %201, %202 : vector<8x32xf32>
      %204 = vector.broadcast %183 : vector<1x32xf32> to vector<8x32xf32>
      %205 = arith.addf %203, %204 : vector<8x32xf32>
      %206 = arith.truncf %205 : vector<8x32xf32> to vector<8x32xbf16>
      %c0_80 = arith.constant 0 : index
      %c0_81 = arith.constant 0 : index
      %207 = vector.load %arg3[%c0_80, %c0_81] : memref<64x32xbf16, #tpu.memory_space<vmem>>, vector<64x32xbf16>
      %cst_82 = arith.constant dense<0.000000e+00> : vector<8x64xf32>
      %208 = tpu.matmul %206, %207, %cst_82 {dimension_numbers = #tpu.dot_dimension_numbers<[1], [1], [0], [0], [0, 0, 1, 0], [], []>} : vector<8x32xbf16>, vector<64x32xbf16>, vector<8x64xf32> -> vector<8x64xf32>
      %cst_83 = arith.constant dense<0xFF800000> : vector<8xf32>
      %209 = vector.multi_reduction <maximumf>, %208, %cst_83 [1] : vector<8x64xf32> to vector<8xf32>
      %210 = vector.shape_cast %209 : vector<8xf32> to vector<8x1xf32>
      %211 = vector.broadcast %210 : vector<8x1xf32> to vector<8x64xf32>
      %212 = arith.subf %208, %211 : vector<8x64xf32>
      %213 = math.exp %212 : vector<8x64xf32>
      %cst_84 = arith.constant dense<0.000000e+00> : vector<8xf32>
      %214 = vector.multi_reduction <add>, %213, %cst_84 [1] : vector<8x64xf32> to vector<8xf32>
      %215 = vector.shape_cast %214 : vector<8xf32> to vector<8x1xf32>
      %216 = math.log %215 : vector<8x1xf32>
      %217 = vector.broadcast %216 : vector<8x1xf32> to vector<8x64xf32>
      %218 = arith.subf %212, %217 : vector<8x64xf32>
      %c0_85 = arith.constant 0 : index
      %c0_86 = arith.constant 0 : index
      %219 = vector.load %arg2[%c0_85, %c0_86] : memref<8x1xi32, #tpu.memory_space<vmem>>, vector<8x1xi32>
      %220 = tpu.iota {dimensions = array<i32: 1>} : vector<8x64xi32>
      %221 = vector.broadcast %219 : vector<8x1xi32> to vector<8x64xi32>
      %222 = arith.cmpi eq, %220, %221 : vector<8x64xi32>
      %223 = arith.extui %222 : vector<8x64xi1> to vector<8x64xi32>
      %224 = arith.sitofp %223 : vector<8x64xi32> to vector<8x64xf32>
      %225 = arith.mulf %224, %218 : vector<8x64xf32>
      %cst_87 = arith.constant dense<0.000000e+00> : vector<8xf32>
      %226 = vector.multi_reduction <add>, %225, %cst_87 [1] : vector<8x64xf32> to vector<8xf32>
      %227 = vector.shape_cast %226 : vector<8xf32> to vector<8x1xf32>
      %cst_88 = arith.constant 0.000000e+00 : f32
      %228 = vector.broadcast %cst_88 : f32 to vector<8x1xf32>
      %229 = arith.subf %228, %227 : vector<8x1xf32>
      %c-100_i32 = arith.constant -100 : i32
      %230 = vector.broadcast %c-100_i32 : i32 to vector<8x1xi32>
      %231 = arith.cmpi ne, %219, %230 : vector<8x1xi32>
      %232 = arith.extui %231 : vector<8x1xi1> to vector<8x1xi32>
      %233 = arith.sitofp %232 : vector<8x1xi32> to vector<8x1xf32>
      %234 = arith.mulf %229, %233 : vector<8x1xf32>
      %cst_89 = arith.constant dense<0.000000e+00> : vector<1xf32>
      %235 = vector.multi_reduction <add>, %234, %cst_89 [0] : vector<8x1xf32> to vector<1xf32>
      %236 = vector.shape_cast %235 : vector<1xf32> to vector<1x1xf32>
      %cst_90 = arith.constant dense<0.000000e+00> : vector<1xf32>
      %237 = vector.multi_reduction <add>, %233, %cst_90 [0] : vector<8x1xf32> to vector<1xf32>
      %238 = vector.shape_cast %237 : vector<1xf32> to vector<1x1xf32>
      %cst_91 = arith.constant 1.000000e+00 : f32
      %239 = vector.broadcast %cst_91 : f32 to vector<1x1xf32>
      %240 = arith.maximumf %238, %239 : vector<1x1xf32>
      %241 = arith.divf %236, %240 : vector<1x1xf32>
      %c0_92 = arith.constant 0 : index
      %c0_93 = arith.constant 0 : index
      %242 = vector.load %arg15[%c0_92, %c0_93] : memref<1x1xf32, #tpu.memory_space<vmem>>, vector<1x1xf32>
      tpu.vector_store %arg15[%c0_92, %c0_93], %241 {strides = array<i32>} : memref<1x1xf32, #tpu.memory_space<vmem>>, vector<1x1xf32>,
    } else {
    }
    return
  }
  func.func @transform_0(%arg0: i32) -> (i32, i32) {
    %c0_i32 = arith.constant 0 : i32
    %c0_i32_0 = arith.constant 0 : i32
    %c0_i32_1 = arith.constant 0 : i32
    return %c0_i32, %c0_i32_0 : i32, i32
  }
  func.func @transform_1(%arg0: i32) -> (i32, i32) {
    %c0_i32 = arith.constant 0 : i32
    %c0_i32_0 = arith.constant 0 : i32
    %c0_i32_1 = arith.constant 0 : i32
    return %c0_i32, %c0_i32_0 : i32, i32
  }
  func.func @transform_2(%arg0: i32) -> (i32, i32) {
    %c0_i32 = arith.constant 0 : i32
    %c0_i32_0 = arith.constant 0 : i32
    %c0_i32_1 = arith.constant 0 : i32
    return %c0_i32, %c0_i32_0 : i32, i32
  }
  func.func @transform_3(%arg0: i32) -> (i32, i32) {
    %c0_i32 = arith.constant 0 : i32
    %c0_i32_0 = arith.constant 0 : i32
    %c0_i32_1 = arith.constant 0 : i32
    return %c0_i32, %c0_i32_0 : i32, i32
  }
  func.func @transform_4(%arg0: i32) -> (i32, i32, i32) {
    %c0_i32 = arith.constant 0 : i32
    %c0_i32_0 = arith.constant 0 : i32
    %c0_i32_1 = arith.constant 0 : i32
    return %arg0, %c0_i32, %c0_i32_0 : i32, i32, i32
  }
  func.func @transform_5(%arg0: i32) -> (i32, i32, i32) {
    %c0_i32 = arith.constant 0 : i32
    %c0_i32_0 = arith.constant 0 : i32
    %c0_i32_1 = arith.constant 0 : i32
    return %arg0, %c0_i32, %c0_i32_0 : i32, i32, i32
  }
  func.func @transform_6(%arg0: i32) -> (i32, i32, i32) {
    %c0_i32 = arith.constant 0 : i32
    %c0_i32_0 = arith.constant 0 : i32
    %c0_i32_1 = arith.constant 0 : i32
    return %arg0, %c0_i32, %c0_i32_0 : i32, i32, i32
  }
  func.func @transform_7(%arg0: i32) -> (i32, i32, i32) {
    %c0_i32 = arith.constant 0 : i32
    %c0_i32_0 = arith.constant 0 : i32
    %c0_i32_1 = arith.constant 0 : i32
    return %arg0, %c0_i32, %c0_i32_0 : i32, i32, i32
  }
  func.func @transform_8(%arg0: i32) -> (i32, i32, i32) {
    %c0_i32 = arith.constant 0 : i32
    %c0_i32_0 = arith.constant 0 : i32
    %c0_i32_1 = arith.constant 0 : i32
    return %arg0, %c0_i32, %c0_i32_0 : i32, i32, i32
  }
  func.func @transform_9(%arg0: i32) -> (i32, i32, i32) {
    %c0_i32 = arith.constant 0 : i32
    %c0_i32_0 = arith.constant 0 : i32
    %c0_i32_1 = arith.constant 0 : i32
    return %arg0, %c0_i32, %c0_i32_0 : i32, i32, i32
  }
  func.func @transform_10(%arg0: i32) -> (i32, i32, i32) {
    %c0_i32 = arith.constant 0 : i32
    %c0_i32_0 = arith.constant 0 : i32
    %c0_i32_1 = arith.constant 0 : i32
    return %arg0, %c0_i32, %c0_i32_0 : i32, i32, i32
  }
  func.func @transform_11(%arg0: i32) -> (i32, i32, i32) {
    %c0_i32 = arith.constant 0 : i32
    %c0_i32_0 = arith.constant 0 : i32
    %c0_i32_1 = arith.constant 0 : i32
    return %arg0, %c0_i32, %c0_i32_0 : i32, i32, i32
  }
  func.func @transform_12(%arg0: i32) -> (i32, i32, i32) {
    %c0_i32 = arith.constant 0 : i32
    %c0_i32_0 = arith.constant 0 : i32
    %c0_i32_1 = arith.constant 0 : i32
    return %arg0, %c0_i32, %c0_i32_0 : i32, i32, i32
  }
  func.func @transform_13(%arg0: i32) -> (i32, i32) {
    %c0_i32 = arith.constant 0 : i32
    %c0_i32_0 = arith.constant 0 : i32
    %c0_i32_1 = arith.constant 0 : i32
    return %c0_i32, %c0_i32_0 : i32, i32
  }
  func.func @transform_14(%arg0: i32) -> (i32, i32) {
    %c0_i32 = arith.constant 0 : i32
    %c0_i32_0 = arith.constant 0 : i32
    %c0_i32_1 = arith.constant 0 : i32
    return %c0_i32, %c0_i32_0 : i32, i32
  }
}

</mosaic_0001>

<llo_original>
// kernel: cag_gpt_forward_loss.1
$region0: #{cag_gpt_forward_loss.1}
  #allocation0 [shape = 'u32[]', space=smem, size = 0x4, offset = 0x4, fixed_abs, tag = 'smem constant byte address 0x4 - core index']
  #allocation1 [shape = 'u32[144,128]{1,0:T(1,128)}', space=vmem, size = 0x12000, scoped, tag = 'internal scratch']
  #allocation2 [shape = 'f32[8,32]{1,0:T(8,128)}', space=vmem, size = 0x1000, scoped, tag = 'scratch operand']
  %s0 = inlined_call_operand.vmem [shape: s32[8,1], index: 0, kind: input, shape index: {}]
  %s1 = inlined_call_operand.vmem [shape: s32[8,1], index: 1, kind: input, shape index: {}]
  %s2 = inlined_call_operand.vmem [shape: bf16[64,32], index: 2, kind: input, shape index: {}]
  %s3 = inlined_call_operand.vmem [shape: f32[8,32], index: 3, kind: input, shape index: {}]
  %s4 = inlined_call_operand.vmem [shape: f32[2,4,32], index: 4, kind: input, shape index: {}]
  %s5 = inlined_call_operand.vmem [shape: bf16[2,32,96], index: 5, kind: input, shape index: {}]
  %s6 = inlined_call_operand.vmem [shape: f32[2,1,96], index: 6, kind: input, shape index: {}]
  %s7 = inlined_call_operand.vmem [shape: bf16[2,32,32], index: 7, kind: input, shape index: {}]
  %s8 = inlined_call_operand.vmem [shape: f32[2,1,32], index: 8, kind: input, shape index: {}]
  %s9 = inlined_call_operand.vmem [shape: bf16[2,32,128], index: 9, kind: input, shape index: {}]
  %s10 = inlined_call_operand.vmem [shape: f32[2,1,128], index: 10, kind: input, shape index: {}]
  %s11 = inlined_call_operand.vmem [shape: bf16[2,128,32], index: 11, kind: input, shape index: {}]
  %s12 = inlined_call_operand.vmem [shape: f32[2,1,32], index: 12, kind: input, shape index: {}]
  %s13 = inlined_call_operand.vmem [shape: f32[2,32], index: 13, kind: input, shape index: {}]
  %s14 = inlined_call_operand.hbm [shape: f32[1,1], index: 14, kind: output, shape index: {}]
  %s15 = sld [smem:[#allocation0]]
  $region97: #{cag_gpt_forward_loss.1} parent=0
    _
  %s17 = ssub.s32 1, %s15
  %s18 = scalar_select 0, %s17, %s15
  $region1: #{cag_gpt_forward_loss.1} parent=0
    #allocation3 [shape = 'u8[512]{0}', space=vmem, size = 0x400, scoped, tag = 'output window, operand 0, single buffered']
    #allocation4 [shape = 's32[2]{0}', space=sflag, size = 0x8, scoped, tag = 'scoped memory for cag_gpt_forward_loss.1']
    %19 = vsyncpa [#allocation4], 0
    loop: start=0, step=1, limit=4
    $region2: #{cag_gpt_forward_loss.1} parent=1 // loop_pre_header
      _
    $region3: #{cag_gpt_forward_loss.1} parent=1 // loop_header
      %s21 = sphi 0, %s25
      %p22 = scmp.ge.s32.totalorder %s21, 4
      %s29 = sphi 0, %s29
      %s31 = sphi 0, %s29
      %s32 = sphi 0, %s31
      %s46 = sphi 0, %s32
      %s50 = sphi 0, %s50
      %s52 = sphi 0, %s50
      %s53 = sphi 0, %s52
      %s67 = sphi 0, %s53
      %s71 = sphi 0, %s71
      %s73 = sphi 0, %s71
      %s74 = sphi 0, %s73
      %s88 = sphi 0, %s74
      %s92 = sphi 0, %s92
      %s94 = sphi 0, %s92
      %s95 = sphi 0, %s94
      %s109 = sphi 0, %s95
      %s115 = sphi 0, %s117
      %s118 = sphi 0, %s115
      %s119 = sphi 0, %s118
      %s135 = sphi 0, %s119
      %s141 = sphi 0, %s143
      %s144 = sphi 0, %s141
      %s145 = sphi 0, %s144
      %s161 = sphi 0, %s145
      %s167 = sphi 0, %s169
      %s170 = sphi 0, %s167
      %s171 = sphi 0, %s170
      %s187 = sphi 0, %s171
      %s193 = sphi 0, %s195
      %s196 = sphi 0, %s193
      %s197 = sphi 0, %s196
      %s213 = sphi 0, %s197
      %s219 = sphi 0, %s221
      %s222 = sphi 0, %s219
      %s223 = sphi 0, %s222
      %s239 = sphi 0, %s223
      %s245 = sphi 0, %s247
      %s248 = sphi 0, %s245
      %s249 = sphi 0, %s248
      %s265 = sphi 0, %s249
      %s271 = sphi 0, %s273
      %s274 = sphi 0, %s271
      %s275 = sphi 0, %s274
      %s291 = sphi 0, %s275
      %s297 = sphi 0, %s299
      %s300 = sphi 0, %s297
      %s301 = sphi 0, %s300
      %s317 = sphi 0, %s301
      %s323 = sphi 0, %s325
      %s326 = sphi 0, %s323
      %s327 = sphi 0, %s326
      %s343 = sphi 0, %s327
      %s347 = sphi 0, %s347
      %s349 = sphi 0, %s347
      %s350 = sphi 0, %s349
      %s364 = sphi 0, %s350
      %s368 = sphi 0, %s368
      %s370 = sphi 0, %s368
      %s371 = sphi 0, %s370
      %s385 = sphi 0, %s371
    $region4: #{cag_gpt_forward_loss.1} parent=1 // loop_header_branch
      %24 = sbr.rel (%p22) target = $region8
    $region5: #{cag_gpt_forward_loss.1} parent=1 // loop_body
      %s26 = ssub.s32 %s21, 1
      %s27 = ssub.s32 %s21, 2
      %s28 = sadd.s32 %s21, 1
      %s30 = sadd.s32 %s29, 1
      %p33 = scmp.eq.s32.totalorder %s21, 1
      %p34 = scmp.ne.s32.totalorder %s29, %s31
      %p35 = scmp.eq.s32.totalorder %s21, 0
      %p36 = por %p34, %p35
      %p37 = scmp.ne.s32.totalorder %s29, %s31
      %p38 = scmp.eq.s32.totalorder %s26, 1
      %p39 = por %p37, %p38
      %p40 = scmp.ne.s32.totalorder %s31, %s32
      %p41 = scmp.eq.s32.totalorder %s26, 0
      %p42 = por %p40, %p41
      %p43 = scmp.ne.s32.totalorder %s31, %s32
      %p44 = scmp.eq.s32.totalorder %s27, 1
      %p45 = por %p43, %p44
      %p47 = scmp.ne.s32.totalorder %s32, %s46
      %p48 = scmp.eq.s32.totalorder %s27, 0
      %p49 = por %p47, %p48
      %s51 = sadd.s32 %s50, 1
      %p54 = scmp.eq.s32.totalorder %s21, 1
      %p55 = scmp.ne.s32.totalorder %s50, %s52
      %p56 = scmp.eq.s32.totalorder %s21, 0
      %p57 = por %p55, %p56
      %p58 = scmp.ne.s32.totalorder %s50, %s52
      %p59 = scmp.eq.s32.totalorder %s26, 1
      %p60 = por %p58, %p59
      %p61 = scmp.ne.s32.totalorder %s52, %s53
      %p62 = scmp.eq.s32.totalorder %s26, 0
      %p63 = por %p61, %p62
      %p64 = scmp.ne.s32.totalorder %s52, %s53
      %p65 = scmp.eq.s32.totalorder %s27, 1
      %p66 = por %p64, %p65
      %p68 = scmp.ne.s32.totalorder %s53, %s67
      %p69 = scmp.eq.s32.totalorder %s27, 0
      %p70 = por %p68, %p69
      %s72 = sadd.s32 %s71, 1
      %p75 = scmp.eq.s32.totalorder %s21, 1
      %p76 = scmp.ne.s32.totalorder %s71, %s73
      %p77 = scmp.eq.s32.totalorder %s21, 0
      %p78 = por %p76, %p77
      %p79 = scmp.ne.s32.totalorder %s71, %s73
      %p80 = scmp.eq.s32.totalorder %s26, 1
      %p81 = por %p79, %p80
      %p82 = scmp.ne.s32.totalorder %s73, %s74
      %p83 = scmp.eq.s32.totalorder %s26, 0
      %p84 = por %p82, %p83
      %p85 = scmp.ne.s32.totalorder %s73, %s74
      %p86 = scmp.eq.s32.totalorder %s27, 1
      %p87 = por %p85, %p86
      %p89 = scmp.ne.s32.totalorder %s74, %s88
      %p90 = scmp.eq.s32.totalorder %s27, 0
      %p91 = por %p89, %p90
      %s93 = sadd.s32 %s92, 1
      %p96 = scmp.eq.s32.totalorder %s21, 1
      %p97 = scmp.ne.s32.totalorder %s92, %s94
      %p98 = scmp.eq.s32.totalorder %s21, 0
      %p99 = por %p97, %p98
      %p100 = scmp.ne.s32.totalorder %s92, %s94
      %p101 = scmp.eq.s32.totalorder %s26, 1
      %p102 = por %p100, %p101
      %p103 = scmp.ne.s32.totalorder %s94, %s95
      %p104 = scmp.eq.s32.totalorder %s26, 0
      %p105 = por %p103, %p104
      %p106 = scmp.ne.s32.totalorder %s94, %s95
      %p107 = scmp.eq.s32.totalorder %s27, 1
      %p108 = por %p106, %p107
      %p110 = scmp.ne.s32.totalorder %s95, %s109
      %p111 = scmp.eq.s32.totalorder %s27, 0
      %p112 = por %p110, %p111
      %s113 = ssub.s32 %s21, %s28
      %p114 = scmp.eq.s32.totalorder %s113, 0
      %s116 = sadd.s32 %s115, 1
      %s117 = scalar_select %p114, %s115, %s116
      %p120 = pneg %p114
      %p121 = scmp.eq.s32.totalorder %s21, 1
      %p122 = por %p120, %p121
      %p123 = scmp.ne.s32.totalorder %s115, %s118
      %p124 = scmp.eq.s32.totalorder %s21, 0
      %p125 = por %p123, %p124
      %p126 = scmp.ne.s32.totalorder %s115, %s118
      %p127 = scmp.eq.s32.totalorder %s26, 1
      %p128 = por %p126, %p127
      %p129 = scmp.ne.s32.totalorder %s118, %s119
      %p130 = scmp.eq.s32.totalorder %s26, 0
      %p131 = por %p129, %p130
      %p132 = scmp.ne.s32.totalorder %s118, %s119
      %p133 = scmp.eq.s32.totalorder %s27, 1
      %p134 = por %p132, %p133
      %p136 = scmp.ne.s32.totalorder %s119, %s135
      %p137 = scmp.eq.s32.totalorder %s27, 0
      %p138 = por %p136, %p137
      %s139 = ssub.s32 %s21, %s28
      %p140 = scmp.eq.s32.totalorder %s139, 0
      %s142 = sadd.s32 %s141, 1
      %s143 = scalar_select %p140, %s141, %s142
      %p146 = pneg %p140
      %p147 = scmp.eq.s32.totalorder %s21, 1
      %p148 = por %p146, %p147
      %p149 = scmp.ne.s32.totalorder %s141, %s144
      %p150 = scmp.eq.s32.totalorder %s21, 0
      %p151 = por %p149, %p150
      %p152 = scmp.ne.s32.totalorder %s141, %s144
      %p153 = scmp.eq.s32.totalorder %s26, 1
      %p154 = por %p152, %p153
      %p155 = scmp.ne.s32.totalorder %s144, %s145
      %p156 = scmp.eq.s32.totalorder %s26, 0
      %p157 = por %p155, %p156
      %p158 = scmp.ne.s32.totalorder %s144, %s145
      %p159 = scmp.eq.s32.totalorder %s27, 1
      %p160 = por %p158, %p159
      %p162 = scmp.ne.s32.totalorder %s145, %s161
      %p163 = scmp.eq.s32.totalorder %s27, 0
      %p164 = por %p162, %p163
      %s165 = ssub.s32 %s21, %s28
      %p166 = scmp.eq.s32.totalorder %s165, 0
      %s168 = sadd.s32 %s167, 1
      %s169 = scalar_select %p166, %s167, %s168
      %p172 = pneg %p166
      %p173 = scmp.eq.s32.totalorder %s21, 1
      %p174 = por %p172, %p173
      %p175 = scmp.ne.s32.totalorder %s167, %s170
      %p176 = scmp.eq.s32.totalorder %s21, 0
      %p177 = por %p175, %p176
      %p178 = scmp.ne.s32.totalorder %s167, %s170
      %p179 = scmp.eq.s32.totalorder %s26, 1
      %p180 = por %p178, %p179
      %p181 = scmp.ne.s32.totalorder %s170, %s171
      %p182 = scmp.eq.s32.totalorder %s26, 0
      %p183 = por %p181, %p182
      %p184 = scmp.ne.s32.totalorder %s170, %s171
      %p185 = scmp.eq.s32.totalorder %s27, 1
      %p186 = por %p184, %p185
      %p188 = scmp.ne.s32.totalorder %s171, %s187
      %p189 = scmp.eq.s32.totalorder %s27, 0
      %p190 = por %p188, %p189
      %s191 = ssub.s32 %s21, %s28
      %p192 = scmp.eq.s32.totalorder %s191, 0
      %s194 = sadd.s32 %s193, 1
      %s195 = scalar_select %p192, %s193, %s194
      %p198 = pneg %p192
      %p199 = scmp.eq.s32.totalorder %s21, 1
      %p200 = por %p198, %p199
      %p201 = scmp.ne.s32.totalorder %s193, %s196
      %p202 = scmp.eq.s32.totalorder %s21, 0
      %p203 = por %p201, %p202
      %p204 = scmp.ne.s32.totalorder %s193, %s196
      %p205 = scmp.eq.s32.totalorder %s26, 1
      %p206 = por %p204, %p205
      %p207 = scmp.ne.s32.totalorder %s196, %s197
      %p208 = scmp.eq.s32.totalorder %s26, 0
      %p209 = por %p207, %p208
      %p210 = scmp.ne.s32.totalorder %s196, %s197
      %p211 = scmp.eq.s32.totalorder %s27, 1
      %p212 = por %p210, %p211
      %p214 = scmp.ne.s32.totalorder %s197, %s213
      %p215 = scmp.eq.s32.totalorder %s27, 0
      %p216 = por %p214, %p215
      %s217 = ssub.s32 %s21, %s28
      %p218 = scmp.eq.s32.totalorder %s217, 0
      %s220 = sadd.s32 %s219, 1
      %s221 = scalar_select %p218, %s219, %s220
      %p224 = pneg %p218
      %p225 = scmp.eq.s32.totalorder %s21, 1
      %p226 = por %p224, %p225
      %p227 = scmp.ne.s32.totalorder %s219, %s222
      %p228 = scmp.eq.s32.totalorder %s21, 0
      %p229 = por %p227, %p228
      %p230 = scmp.ne.s32.totalorder %s219, %s222
      %p231 = scmp.eq.s32.totalorder %s26, 1
      %p232 = por %p230, %p231
      %p233 = scmp.ne.s32.totalorder %s222, %s223
      %p234 = scmp.eq.s32.totalorder %s26, 0
      %p235 = por %p233, %p234
      %p236 = scmp.ne.s32.totalorder %s222, %s223
      %p237 = scmp.eq.s32.totalorder %s27, 1
      %p238 = por %p236, %p237
      %p240 = scmp.ne.s32.totalorder %s223, %s239
      %p241 = scmp.eq.s32.totalorder %s27, 0
      %p242 = por %p240, %p241
      %s243 = ssub.s32 %s21, %s28
      %p244 = scmp.eq.s32.totalorder %s243, 0
      %s246 = sadd.s32 %s245, 1
      %s247 = scalar_select %p244, %s245, %s246
      %p250 = pneg %p244
      %p251 = scmp.eq.s32.totalorder %s21, 1
      %p252 = por %p250, %p251
      %p253 = scmp.ne.s32.totalorder %s245, %s248
      %p254 = scmp.eq.s32.totalorder %s21, 0
      %p255 = por %p253, %p254
      %p256 = scmp.ne.s32.totalorder %s245, %s248
      %p257 = scmp.eq.s32.totalorder %s26, 1
      %p258 = por %p256, %p257
      %p259 = scmp.ne.s32.totalorder %s248, %s249
      %p260 = scmp.eq.s32.totalorder %s26, 0
      %p261 = por %p259, %p260
      %p262 = scmp.ne.s32.totalorder %s248, %s249
      %p263 = scmp.eq.s32.totalorder %s27, 1
      %p264 = por %p262, %p263
      %p266 = scmp.ne.s32.totalorder %s249, %s265
      %p267 = scmp.eq.s32.totalorder %s27, 0
      %p268 = por %p266, %p267
      %s269 = ssub.s32 %s21, %s28
      %p270 = scmp.eq.s32.totalorder %s269, 0
      %s272 = sadd.s32 %s271, 1
      %s273 = scalar_select %p270, %s271, %s272
      %p276 = pneg %p270
      %p277 = scmp.eq.s32.totalorder %s21, 1
      %p278 = por %p276, %p277
      %p279 = scmp.ne.s32.totalorder %s271, %s274
      %p280 = scmp.eq.s32.totalorder %s21, 0
      %p281 = por %p279, %p280
      %p282 = scmp.ne.s32.totalorder %s271, %s274
      %p283 = scmp.eq.s32.totalorder %s26, 1
      %p284 = por %p282, %p283
      %p285 = scmp.ne.s32.totalorder %s274, %s275
      %p286 = scmp.eq.s32.totalorder %s26, 0
      %p287 = por %p285, %p286
      %p288 = scmp.ne.s32.totalorder %s274, %s275
      %p289 = scmp.eq.s32.totalorder %s27, 1
      %p290 = por %p288, %p289
      %p292 = scmp.ne.s32.totalorder %s275, %s291
      %p293 = scmp.eq.s32.totalorder %s27, 0
      %p294 = por %p292, %p293
      %s295 = ssub.s32 %s21, %s28
      %p296 = scmp.eq.s32.totalorder %s295, 0
      %s298 = sadd.s32 %s297, 1
      %s299 = scalar_select %p296, %s297, %s298
      %p302 = pneg %p296
      %p303 = scmp.eq.s32.totalorder %s21, 1
      %p304 = por %p302, %p303
      %p305 = scmp.ne.s32.totalorder %s297, %s300
      %p306 = scmp.eq.s32.totalorder %s21, 0
      %p307 = por %p305, %p306
      %p308 = scmp.ne.s32.totalorder %s297, %s300
      %p309 = scmp.eq.s32.totalorder %s26, 1
      %p310 = por %p308, %p309
      %p311 = scmp.ne.s32.totalorder %s300, %s301
      %p312 = scmp.eq.s32.totalorder %s26, 0
      %p313 = por %p311, %p312
      %p314 = scmp.ne.s32.totalorder %s300, %s301
      %p315 = scmp.eq.s32.totalorder %s27, 1
      %p316 = por %p314, %p315
      %p318 = scmp.ne.s32.totalorder %s301, %s317
      %p319 = scmp.eq.s32.totalorder %s27, 0
      %p320 = por %p318, %p319
      %s321 = ssub.s32 %s21, %s28
      %p322 = scmp.eq.s32.totalorder %s321, 0
      %s324 = sadd.s32 %s323, 1
      %s325 = scalar_select %p322, %s323, %s324
      %p328 = pneg %p322
      %p329 = scmp.eq.s32.totalorder %s21, 1
      %p330 = por %p328, %p329
      %p331 = scmp.ne.s32.totalorder %s323, %s326
      %p332 = scmp.eq.s32.totalorder %s21, 0
      %p333 = por %p331, %p332
      %p334 = scmp.ne.s32.totalorder %s323, %s326
      %p335 = scmp.eq.s32.totalorder %s26, 1
      %p336 = por %p334, %p335
      %p337 = scmp.ne.s32.totalorder %s326, %s327
      %p338 = scmp.eq.s32.totalorder %s26, 0
      %p339 = por %p337, %p338
      %p340 = scmp.ne.s32.totalorder %s326, %s327
      %p341 = scmp.eq.s32.totalorder %s27, 1
      %p342 = por %p340, %p341
      %p344 = scmp.ne.s32.totalorder %s327, %s343
      %p345 = scmp.eq.s32.totalorder %s27, 0
      %p346 = por %p344, %p345
      %s348 = sadd.s32 %s347, 1
      %p351 = scmp.eq.s32.totalorder %s21, 1
      %p352 = scmp.ne.s32.totalorder %s347, %s349
      %p353 = scmp.eq.s32.totalorder %s21, 0
      %p354 = por %p352, %p353
      %p355 = scmp.ne.s32.totalorder %s347, %s349
      %p356 = scmp.eq.s32.totalorder %s26, 1
      %p357 = por %p355, %p356
      %p358 = scmp.ne.s32.totalorder %s349, %s350
      %p359 = scmp.eq.s32.totalorder %s26, 0
      %p360 = por %p358, %p359
      %p361 = scmp.ne.s32.totalorder %s349, %s350
      %p362 = scmp.eq.s32.totalorder %s27, 1
      %p363 = por %p361, %p362
      %p365 = scmp.ne.s32.totalorder %s350, %s364
      %p366 = scmp.eq.s32.totalorder %s27, 0
      %p367 = por %p365, %p366
      %s369 = sadd.s32 %s368, 1
      %p372 = scmp.eq.s32.totalorder %s21, 1
      %p373 = scmp.ne.s32.totalorder %s368, %s370
      %p374 = scmp.eq.s32.totalorder %s21, 0
      %p375 = por %p373, %p374
      %p376 = scmp.ne.s32.totalorder %s368, %s370
      %p377 = scmp.eq.s32.totalorder %s26, 1
      %p378 = por %p376, %p377
      %p379 = scmp.ne.s32.totalorder %s370, %s371
      %p380 = scmp.eq.s32.totalorder %s26, 0
      %p381 = por %p379, %p380
      %p382 = scmp.ne.s32.totalorder %s370, %s371
      %p383 = scmp.eq.s32.totalorder %s27, 1
      %p384 = por %p382, %p383
      %p386 = scmp.ne.s32.totalorder %s371, %s385
      %p387 = scmp.eq.s32.totalorder %s27, 0
      %p388 = por %p386, %p387
      %p389 = scmp.le.s32.totalorder 1, %s21
      %p390 = scmp.lt.s32.totalorder %s21, 3
      %p391 = pnand %p389, %p390
      %p392 = pneg %p391
      // Predicated region
      $region9: #{cag_gpt_forward_loss.1} parent=5 // pred_check
        _
      $region10: #{cag_gpt_forward_loss.1} parent=5 // pred_check_branch
        %394 = sbr.rel (%p391) target = $region12
      $region11: #{cag_gpt_forward_loss.1} parent=5 // pred_region
        %s395 = ssub.s32 %s21, 1
        // Predicated region
        $region13: #{cag_gpt_forward_loss.1} parent=11 // pred_check
          %p396 = pneg %p42
        $region14: #{cag_gpt_forward_loss.1} parent=11 // pred_check_branch
          %398 = sbr.rel (%p396) target = $region16
        $region15: #{cag_gpt_forward_loss.1} parent=11 // pred_region
          _
        $region16: #{cag_gpt_forward_loss.1} parent=11 // pred_fallthru
          _
        // Predicated region
        $region17: #{cag_gpt_forward_loss.1} parent=11 // pred_check
          %p399 = pneg %p63
        $region18: #{cag_gpt_forward_loss.1} parent=11 // pred_check_branch
          %401 = sbr.rel (%p399) target = $region20
        $region19: #{cag_gpt_forward_loss.1} parent=11 // pred_region
          _
        $region20: #{cag_gpt_forward_loss.1} parent=11 // pred_fallthru
          _
        // Predicated region
        $region21: #{cag_gpt_forward_loss.1} parent=11 // pred_check
          %p402 = pneg %p84
        $region22: #{cag_gpt_forward_loss.1} parent=11 // pred_check_branch
          %404 = sbr.rel (%p402) target = $region24
        $region23: #{cag_gpt_forward_loss.1} parent=11 // pred_region
          _
        $region24: #{cag_gpt_forward_loss.1} parent=11 // pred_fallthru
          _
        // Predicated region
        $region25: #{cag_gpt_forward_loss.1} parent=11 // pred_check
          %p405 = pneg %p105
        $region26: #{cag_gpt_forward_loss.1} parent=11 // pred_check_branch
          %407 = sbr.rel (%p405) target = $region28
        $region27: #{cag_gpt_forward_loss.1} parent=11 // pred_region
          _
        $region28: #{cag_gpt_forward_loss.1} parent=11 // pred_fallthru
          _
        // Predicated region
        $region29: #{cag_gpt_forward_loss.1} parent=11 // pred_check
          %p408 = pneg %p360
        $region30: #{cag_gpt_forward_loss.1} parent=11 // pred_check_branch
          %410 = sbr.rel (%p408) target = $region32
        $region31: #{cag_gpt_forward_loss.1} parent=11 // pred_region
          _
        $region32: #{cag_gpt_forward_loss.1} parent=11 // pred_fallthru
          _
      $region12: #{cag_gpt_forward_loss.1} parent=5 // pred_fallthru
        _
      %p411 = scmp.lt.s32.totalorder %s21, 2
      // Predicated region
      $region33: #{cag_gpt_forward_loss.1} parent=5 // pred_check
        %p412 = pneg %p411
      $region34: #{cag_gpt_forward_loss.1} parent=5 // pred_check_branch
        %414 = sbr.rel (%p412) target = $region36
      $region35: #{cag_gpt_forward_loss.1} parent=5 // pred_region
        // Predicated region
        $region37: #{cag_gpt_forward_loss.1} parent=35 // pred_check
          %p415 = pneg %p125
        $region38: #{cag_gpt_forward_loss.1} parent=35 // pred_check_branch
          %417 = sbr.rel (%p415) target = $region40
        $region39: #{cag_gpt_forward_loss.1} parent=35 // pred_region
          %p418 = scmp.lt.s32.totalorder %s21, 1
          %s419 = scalar_select %p418, %s21, 1
          %s420 = smul.addr %s419, 4
          %s421 = scalar_lea.vmem %s4, %s420
        $region40: #{cag_gpt_forward_loss.1} parent=35 // pred_fallthru
          _
        // Predicated region
        $region41: #{cag_gpt_forward_loss.1} parent=35 // pred_check
          %p422 = pneg %p151
        $region42: #{cag_gpt_forward_loss.1} parent=35 // pred_check_branch
          %424 = sbr.rel (%p422) target = $region44
        $region43: #{cag_gpt_forward_loss.1} parent=35 // pred_region
          %p425 = scmp.lt.s32.totalorder %s21, 1
          %s426 = scalar_select %p425, %s21, 1
          %s427 = smul.addr %s426, 4
          %s428 = smul.addr %s427, 4
          %s429 = scalar_lea.vmem %s5, %s428
        $region44: #{cag_gpt_forward_loss.1} parent=35 // pred_fallthru
          _
        // Predicated region
        $region45: #{cag_gpt_forward_loss.1} parent=35 // pred_check
          %p430 = pneg %p177
        $region46: #{cag_gpt_forward_loss.1} parent=35 // pred_check_branch
          %432 = sbr.rel (%p430) target = $region48
        $region47: #{cag_gpt_forward_loss.1} parent=35 // pred_region
          %p433 = scmp.lt.s32.totalorder %s21, 1
          %s434 = scalar_select %p433, %s21, 1
          %s435 = scalar_lea.vmem %s6, %s434
        $region48: #{cag_gpt_forward_loss.1} parent=35 // pred_fallthru
          _
        // Predicated region
        $region49: #{cag_gpt_forward_loss.1} parent=35 // pred_check
          %p436 = pneg %p203
        $region50: #{cag_gpt_forward_loss.1} parent=35 // pred_check_branch
          %438 = sbr.rel (%p436) target = $region52
        $region51: #{cag_gpt_forward_loss.1} parent=35 // pred_region
          %p439 = scmp.lt.s32.totalorder %s21, 1
          %s440 = scalar_select %p439, %s21, 1
          %s441 = smul.addr %s440, 4
          %s442 = smul.addr %s441, 4
          %s443 = scalar_lea.vmem %s7, %s442
        $region52: #{cag_gpt_forward_loss.1} parent=35 // pred_fallthru
          _
        // Predicated region
        $region53: #{cag_gpt_forward_loss.1} parent=35 // pred_check
          %p444 = pneg %p229
        $region54: #{cag_gpt_forward_loss.1} parent=35 // pred_check_branch
          %446 = sbr.rel (%p444) target = $region56
        $region55: #{cag_gpt_forward_loss.1} parent=35 // pred_region
          %p447 = scmp.lt.s32.totalorder %s21, 1
          %s448 = scalar_select %p447, %s21, 1
          %s449 = scalar_lea.vmem %s8, %s448
        $region56: #{cag_gpt_forward_loss.1} parent=35 // pred_fallthru
          _
        // Predicated region
        $region57: #{cag_gpt_forward_loss.1} parent=35 // pred_check
          %p450 = pneg %p255
        $region58: #{cag_gpt_forward_loss.1} parent=35 // pred_check_branch
          %452 = sbr.rel (%p450) target = $region60
        $region59: #{cag_gpt_forward_loss.1} parent=35 // pred_region
          %p453 = scmp.lt.s32.totalorder %s21, 1
          %s454 = scalar_select %p453, %s21, 1
          %s455 = smul.addr %s454, 4
          %s456 = smul.addr %s455, 4
          %s457 = scalar_lea.vmem %s9, %s456
        $region60: #{cag_gpt_forward_loss.1} parent=35 // pred_fallthru
          _
        // Predicated region
        $region61: #{cag_gpt_forward_loss.1} parent=35 // pred_check
          %p458 = pneg %p281
        $region62: #{cag_gpt_forward_loss.1} parent=35 // pred_check_branch
          %460 = sbr.rel (%p458) target = $region64
        $region63: #{cag_gpt_forward_loss.1} parent=35 // pred_region
          %p461 = scmp.lt.s32.totalorder %s21, 1
          %s462 = scalar_select %p461, %s21, 1
          %s463 = scalar_lea.vmem %s10, %s462
        $region64: #{cag_gpt_forward_loss.1} parent=35 // pred_fallthru
          _
        // Predicated region
        $region65: #{cag_gpt_forward_loss.1} parent=35 // pred_check
          %p464 = pneg %p307
        $region66: #{cag_gpt_forward_loss.1} parent=35 // pred_check_branch
          %466 = sbr.rel (%p464) target = $region68
        $region67: #{cag_gpt_forward_loss.1} parent=35 // pred_region
          %p467 = scmp.lt.s32.totalorder %s21, 1
          %s468 = scalar_select %p467, %s21, 1
          %s469 = smul.addr %s468, 16
          %s470 = smul.addr %s469, 4
          %s471 = scalar_lea.vmem %s11, %s470
        $region68: #{cag_gpt_forward_loss.1} parent=35 // pred_fallthru
          _
        // Predicated region
        $region69: #{cag_gpt_forward_loss.1} parent=35 // pred_check
          %p472 = pneg %p333
        $region70: #{cag_gpt_forward_loss.1} parent=35 // pred_check_branch
          %474 = sbr.rel (%p472) target = $region72
        $region71: #{cag_gpt_forward_loss.1} parent=35 // pred_region
          %p475 = scmp.lt.s32.totalorder %s21, 1
          %s476 = scalar_select %p475, %s21, 1
          %s477 = scalar_lea.vmem %s12, %s476
        $region72: #{cag_gpt_forward_loss.1} parent=35 // pred_fallthru
          _
      $region36: #{cag_gpt_forward_loss.1} parent=5 // pred_fallthru
        _
      %p478 = scmp.le.s32.totalorder 1, %s21
      %p479 = scmp.lt.s32.totalorder %s21, 3
      %p480 = pnand %p478, %p479
      %p481 = pneg %p480
      // Predicated region
      $region73: #{cag_gpt_forward_loss.1} parent=5 // pred_check
        _
      $region74: #{cag_gpt_forward_loss.1} parent=5 // pred_check_branch
        %483 = sbr.rel (%p480) target = $region76
      $region75: #{cag_gpt_forward_loss.1} parent=5 // pred_region
        %s484 = ssub.s32 %s21, 1
        %p485 = pneg %p42
        %p486 = pneg %p39
        %p487 = pneg %p63
        %p488 = pneg %p60
        %p489 = pneg %p84
        %p490 = pneg %p81
        %p491 = pneg %p105
        %p492 = pneg %p102
        %p493 = scmp.lt.s32.totalorder %s26, 1
        %s494 = scalar_select %p493, %s26, 1
        %s495 = smul.addr %s494, 4
        %s496 = scalar_lea.vmem %s4, %s495
        %p497 = pneg %p131
        %p498 = pneg %p128
        %p499 = scmp.lt.s32.totalorder %s26, 1
        %s500 = scalar_select %p499, %s26, 1
        %s501 = smul.addr %s500, 4
        %s502 = smul.addr %s501, 4
        %s503 = scalar_lea.vmem %s5, %s502
        %p504 = pneg %p157
        %p505 = pneg %p154
        %p506 = scmp.lt.s32.totalorder %s26, 1
        %s507 = scalar_select %p506, %s26, 1
        %s508 = scalar_lea.vmem %s6, %s507
        %p509 = pneg %p183
        %p510 = pneg %p180
        %p511 = scmp.lt.s32.totalorder %s26, 1
        %s512 = scalar_select %p511, %s26, 1
        %s513 = smul.addr %s512, 4
        %s514 = smul.addr %s513, 4
        %s515 = scalar_lea.vmem %s7, %s514
        %p516 = pneg %p209
        %p517 = pneg %p206
        %p518 = scmp.lt.s32.totalorder %s26, 1
        %s519 = scalar_select %p518, %s26, 1
        %s520 = scalar_lea.vmem %s8, %s519
        %p521 = pneg %p235
        %p522 = pneg %p232
        %p523 = scmp.lt.s32.totalorder %s26, 1
        %s524 = scalar_select %p523, %s26, 1
        %s525 = smul.addr %s524, 4
        %s526 = smul.addr %s525, 4
        %s527 = scalar_lea.vmem %s9, %s526
        %p528 = pneg %p261
        %p529 = pneg %p258
        %p530 = scmp.lt.s32.totalorder %s26, 1
        %s531 = scalar_select %p530, %s26, 1
        %s532 = scalar_lea.vmem %s10, %s531
        %p533 = pneg %p287
        %p534 = pneg %p284
        %p535 = scmp.lt.s32.totalorder %s26, 1
        %s536 = scalar_select %p535, %s26, 1
        %s537 = smul.addr %s536, 16
        %s538 = smul.addr %s537, 4
        %s539 = scalar_lea.vmem %s11, %s538
        %p540 = pneg %p313
        %p541 = pneg %p310
        %p542 = scmp.lt.s32.totalorder %s26, 1
        %s543 = scalar_select %p542, %s26, 1
        %s544 = scalar_lea.vmem %s12, %s543
        %p545 = pneg %p339
        %p546 = pneg %p336
        %p547 = pneg %p360
        %p548 = pneg %p357
        %p549 = pneg %p381
        %p550 = pneg %p378
        %p551 = scmp.lt.s32.totalorder %s26, 1
        %s552 = scalar_select %p551, %s26, 1
        %s553 = smul.addr %s552, 4
        %s554 = scalar_lea.vmem %s4, %s553
        %p555 = scmp.lt.s32.totalorder %s26, 1
        %s556 = scalar_select %p555, %s26, 1
        %s557 = smul.addr %s556, 4
        %s558 = smul.addr %s557, 4
        %s559 = scalar_lea.vmem %s5, %s558
        %p560 = scmp.lt.s32.totalorder %s26, 1
        %s561 = scalar_select %p560, %s26, 1
        %s562 = scalar_lea.vmem %s6, %s561
        %p563 = scmp.lt.s32.totalorder %s26, 1
        %s564 = scalar_select %p563, %s26, 1
        %s565 = smul.addr %s564, 4
        %s566 = smul.addr %s565, 4
        %s567 = scalar_lea.vmem %s7, %s566
        %p568 = scmp.lt.s32.totalorder %s26, 1
        %s569 = scalar_select %p568, %s26, 1
        %s570 = scalar_lea.vmem %s8, %s569
        %p571 = scmp.lt.s32.totalorder %s26, 1
        %s572 = scalar_select %p571, %s26, 1
        %s573 = smul.addr %s572, 4
        %s574 = smul.addr %s573, 4
        %s575 = scalar_lea.vmem %s9, %s574
        %p576 = scmp.lt.s32.totalorder %s26, 1
        %s577 = scalar_select %p576, %s26, 1
        %s578 = scalar_lea.vmem %s10, %s577
        %p579 = scmp.lt.s32.totalorder %s26, 1
        %s580 = scalar_select %p579, %s26, 1
        %s581 = smul.addr %s580, 16
        %s582 = smul.addr %s581, 4
        %s583 = scalar_lea.vmem %s11, %s582
        %p584 = scmp.lt.s32.totalorder %s26, 1
        %s585 = scalar_select %p584, %s26, 1
        %s586 = scalar_lea.vmem %s12, %s585
        %p588 = scmp.eq.s32.totalorder %s26, 0
        // Predicated region
        $region77: #{cag_gpt_forward_loss.1} parent=75 // pred_check
          %p589 = pneg %p588
        $region78: #{cag_gpt_forward_loss.1} parent=75 // pred_check_branch
          %591 = sbr.rel (%p589) target = $region80
        $region79: #{cag_gpt_forward_loss.1} parent=75 // pred_region
          %v592 = vld [vmem:[%s0] sm:$0xff]
          %v593 = vlaneseq
          %v594 = vand.u32 %v593, 127
          %595 = vset.pattern.permute.xlu0 0
          %596 = vperm.xlu0 %595, %v592
          %v597 = vpop.permute.xlu0 %596
          %vm598 = vcmp.eq.s32.totalorder %v594, %v597
          %v599 = vsel %vm598, 1, 0
          %v600 = vcvt.s32.f32 %v599
          %v601 = vpack.c.bf16 %v600, %v600
          %v602 = vld [vmem:[%s2] sm:$0xf]
          %v603 = vld [vmem:[%s2 + $0x4] sm:$0xf]
          %v604 = vld [vmem:[%s2 + $0x8] sm:$0xf]
          %v605 = vld [vmem:[%s2 + $0xc] sm:$0xf]
          %v606 = vld [vmem:[%s2 + $0x10] sm:$0xf]
          %v607 = vld [vmem:[%s2 + $0x14] sm:$0xf]
          %v608 = vld [vmem:[%s2 + $0x18] sm:$0xf]
          %v609 = vld [vmem:[%s2 + $0x1c] sm:$0xf]
          %v610 = vld [vmem:[%s3] sm:$0xff]
          %v619 = vunpack.c.l.b16 %v602
          %v620 = vunpack.c.l.b16 %v603
          %v621 = vunpack.c.l.b16 %v604
          %v622 = vunpack.c.l.b16 %v605
          %v623 = vunpack.c.l.b16 %v606
          %v624 = vunpack.c.l.b16 %v607
          %v625 = vunpack.c.l.b16 %v608
          %v626 = vunpack.c.l.b16 %v609
          %v627 = vpack.c.b16 %v620, %v619
          %v628 = vpack.c.b16 %v622, %v621
          %v629 = vpack.c.b16 %v624, %v623
          %v630 = vpack.c.b16 %v626, %v625
          %vm635 = vcmask 523264
          %v637 = vsel %vm635, %v601, 0
          %639 = vmatprep.subr.bf16.mxu0 0
          %640 = vmatpush1.bf16.msra.mxu0 %v627
          %641 = vmatprep.subr.bf16.mxu0 0
          %642 = vmatpush1.bf16.msra.mxu0 %v628
          %643 = vmatprep.subr.bf16.mxu0 0
          %644 = vmatpush1.bf16.msra.mxu0 %v629
          %645 = vmatprep.subr.bf16.mxu0 0
          %646 = vmatpush1.bf16.msra.mxu0 %v630
          %647 = vmatprep.subr.bf16.mxu0 0
          %648 = vmatpush1.bf16.msra.mxu0 0
          %649 = vmatprep.subr.bf16.mxu0 0
          %650 = vmatpush1.bf16.msra.mxu0 0
          %651 = vmatprep.subr.bf16.mxu0 0
          %652 = vmatpush1.bf16.msra.mxu0 0
          %653 = vmatprep.subr.bf16.mxu0 0
          %654 = vmatpush1.bf16.msra.mxu0 0
          %655 = vmatprep.subr.bf16.mxu0 0
          %656 = vmatpush1.bf16.msra.mxu0 0
          %657 = vmatprep.subr.bf16.mxu0 0
          %658 = vmatpush1.bf16.msra.mxu0 0
          %659 = vmatprep.subr.bf16.mxu0 0
          %660 = vmatpush1.bf16.msra.mxu0 0
          %661 = vmatprep.subr.bf16.mxu0 0
          %662 = vmatpush1.bf16.msra.mxu0 0
          %663 = vmatprep.subr.bf16.mxu0 0
          %664 = vmatpush1.bf16.msra.mxu0 0
          %665 = vmatprep.subr.bf16.mxu0 0
          %666 = vmatpush1.bf16.msra.mxu0 0
          %667 = vmatprep.subr.bf16.mxu0 0
          %668 = vmatpush1.bf16.msra.mxu0 0
          %669 = vmatprep.subr.bf16.mxu0 0
          %670 = vmatpush1.bf16.msra.mxu0 0
          %671 = vmatprep.mubr.bf16.mxu0 0
          %672 = vmatmul.mubr.bf16.gmra.mrb[0].mxu0 %v637
          %v673 = vpop.f32.mrb[0].mxu0
          %v674 = vadd.f32 %v610, %v673
          %v675 = vpop.f32.mrb[0].mxu0
          %v676 = vpop.f32.mrb[0].mxu0
          %v677 = vpop.f32.mrb[0].mxu0
          %678 = vdwg.mxu0
          %vm679 = vcmask 261120
          %680 = vst.msk [vmem:[#allocation2] sm:$0xff] %vm679, %v674
        $region80: #{cag_gpt_forward_loss.1} parent=75 // pred_fallthru
          _
        %v681 = vld [vmem:[#allocation2] sm:$0xff]
        %v682 = vld [vmem:[%s554] sm:$0xf]
        %vm683 = vcmask 261120
        %v684 = vsel %vm683, %v681, 0.0
        %685 = vadd.xlane.f32.xlu0 %v684
        %v686 = vpop.xlane.xlu0 %685
        %v687 = vrcp.pop 32.0
        %v688 = vmul.f32 %v686, %v687
        %v689 = vsub.f32 %v681, %v688
        %v690 = vmul.f32 %v689, %v689
        %v691 = vsel %vm683, %v690, 0.0
        %692 = vadd.xlane.f32.xlu0 %v691
        %v693 = vpop.xlane.xlu0 %692
        %v694 = vmul.f32 %v693, %v687
        %v695 = vadd.f32 %v694, 1e-05
        %v696 = vrsqrt.pop %v695
        %v697 = vmul.f32 %v689, %v696
        %v698 = vlaneseq
        %v699 = vshrl.u32 %v698, 7
        %v700 = vsub.s32 0, %v699
        %v701 = vrot.slane %v682, %v700
        %v702 = vmul.f32 %v697, %v701
        %v703 = vlaneseq
        %v704 = vshrl.u32 %v703, 7
        %v705 = vsub.s32 1, %v704
        %v706 = vrot.slane %v682, %v705
        %v707 = vadd.f32 %v702, %v706
        %v708 = vld [vmem:[%s559] sm:$0xf]
        %v709 = vld [vmem:[%s559 + $0x4] sm:$0xf]
        %v710 = vld [vmem:[%s559 + $0x8] sm:$0xf]
        %v711 = vld [vmem:[%s559 + $0xc] sm:$0xf]
        %v712 = vpack.c.bf16 %v707, %v707
        %v713 = vld [vmem:[%s562] sm:$0x1]
        %v715 = vlaneseq
        %v716 = vshrl.u32 %v715, 7
        %v717 = vsub.s32 0, %v716
        %v718 = vrot.slane %v713, %v717
        %v724 = vunpack.c.l.b16 %v708
        %v725 = vunpack.c.l.b16 %v709
        %v726 = vunpack.c.l.b16 %v710
        %v727 = vunpack.c.l.b16 %v711
        %v728 = vpack.c.b16 %v725, %v724
        %v729 = vpack.c.b16 %v727, %v726
        %v733 = vsel %vm683, %v712, 0
        %735 = vmatprep.subr.bf16.mxu0 0
        %736 = vmatpush1.bf16.msra.mxu0 %v728
        %737 = vmatprep.subr.bf16.mxu0 0
        %738 = vmatpush1.bf16.msra.mxu0 %v729
        %739 = vmatprep.subr.bf16.mxu0 0
        %740 = vmatpush1.bf16.msra.mxu0 0
        %741 = vmatprep.subr.bf16.mxu0 0
        %742 = vmatpush1.bf16.msra.mxu0 0
        %743 = vmatprep.subr.bf16.mxu0 0
        %744 = vmatpush1.bf16.msra.mxu0 0
        %745 = vmatprep.subr.bf16.mxu0 0
        %746 = vmatpush1.bf16.msra.mxu0 0
        %747 = vmatprep.subr.bf16.mxu0 0
        %748 = vmatpush1.bf16.msra.mxu0 0
        %749 = vmatprep.subr.bf16.mxu0 0
        %750 = vmatpush1.bf16.msra.mxu0 0
        %751 = vmatprep.subr.bf16.mxu0 0
        %752 = vmatpush1.bf16.msra.mxu0 0
        %753 = vmatprep.subr.bf16.mxu0 0
        %754 = vmatpush1.bf16.msra.mxu0 0
        %755 = vmatprep.subr.bf16.mxu0 0
        %756 = vmatpush1.bf16.msra.mxu0 0
        %757 = vmatprep.subr.bf16.mxu0 0
        %758 = vmatpush1.bf16.msra.mxu0 0
        %759 = vmatprep.subr.bf16.mxu0 0
        %760 = vmatpush1.bf16.msra.mxu0 0
        %761 = vmatprep.subr.bf16.mxu0 0
        %762 = vmatpush1.bf16.msra.mxu0 0
        %763 = vmatprep.subr.bf16.mxu0 0
        %764 = vmatpush1.bf16.msra.mxu0 0
        %765 = vmatprep.subr.bf16.mxu0 0
        %766 = vmatpush1.bf16.msra.mxu0 0
        %767 = vmatprep.mubr.bf16.mxu0 0
        %768 = vmatmul.mubr.bf16.gmra.mrb[0].mxu0 %v733
        %v769 = vpop.f32.mrb[0].mxu0
        %v770 = vadd.f32 %v718, %v769
        %v771 = vpop.f32.mrb[0].mxu0
        %v772 = vpop.f32.mrb[0].mxu0
        %v773 = vpop.f32.mrb[0].mxu0
        %774 = vdwg.mxu0
        %v775 = vlaneseq
        %v776 = vshrl.u32 %v775, 7
        %v777 = vlaneseq
        %v778 = vand.u32 %v777, 127
        %vm779 = vcmp.le.s32.totalorder %v778, %v776
        %781 = vrot.lane.b32.xlu0 %v770, 96
        %v782 = vpop.permute.xlu0 %781
        %vm783 = vcmask 64512
        %v784 = vsel %vm783, %v770, 0
        %v786 = vsel %vm783, %v782, 0
        %788 = vmatprep.subr.mxu0 0.0
        %789 = vmatpush1.xpose.msra.mxu0 %v786
        %790 = vmatprep.subr.mxu0 0.0
        %791 = vmatpush1.xpose.msra.mxu0 0.0
        %792 = vmatprep.subr.mxu0 0.0
        %793 = vmatpush1.xpose.msra.mxu0 0.0
        %794 = vmatprep.subr.mxu0 0.0
        %795 = vmatpush1.xpose.msra.mxu0 0.0
        %796 = vmatprep.subr.mxu0 0.0
        %797 = vmatpush1.xpose.msra.mxu0 0.0
        %798 = vmatprep.subr.mxu0 0.0
        %799 = vmatpush1.xpose.msra.mxu0 0.0
        %800 = vmatprep.subr.mxu0 0.0
        %801 = vmatpush1.xpose.msra.mxu0 0.0
        %802 = vmatprep.subr.mxu0 0.0
        %803 = vmatpush1.xpose.msra.mxu0 0.0
        %804 = vmatprep.subr.mxu0 0.0
        %805 = vmatpush1.xpose.msra.mxu0 0.0
        %806 = vmatprep.subr.mxu0 0.0
        %807 = vmatpush1.xpose.msra.mxu0 0.0
        %808 = vmatprep.subr.mxu0 0.0
        %809 = vmatpush1.xpose.msra.mxu0 0.0
        %810 = vmatprep.subr.mxu0 0.0
        %811 = vmatpush1.xpose.msra.mxu0 0.0
        %812 = vmatprep.subr.mxu0 0.0
        %813 = vmatpush1.xpose.msra.mxu0 0.0
        %814 = vmatprep.subr.mxu0 0.0
        %815 = vmatpush1.xpose.msra.mxu0 0.0
        %816 = vmatprep.subr.mxu0 0.0
        %817 = vmatpush1.xpose.msra.mxu0 0.0
        %818 = vmatprep.subr.mxu0 0.0
        %819 = vmatpush1.xpose.msra.mxu0 0.0
        %820 = vmatprep.subr.mxu0 0.0
        %821 = vmatpush1.xpose.msra.mxu0 0.0
        %822 = vmatprep.subr.mxu0 0.0
        %823 = vmatpush1.xpose.msra.mxu0 0.0
        %824 = vmatprep.subr.mxu0 0.0
        %825 = vmatpush1.xpose.msra.mxu0 0.0
        %826 = vmatprep.subr.mxu0 0.0
        %827 = vmatpush1.xpose.msra.mxu0 0.0
        %828 = vmatprep.subr.mxu0 0.0
        %829 = vmatpush1.xpose.msra.mxu0 0.0
        %830 = vmatprep.subr.mxu0 0.0
        %831 = vmatpush1.xpose.msra.mxu0 0.0
        %832 = vmatprep.subr.mxu0 0.0
        %833 = vmatpush1.xpose.msra.mxu0 0.0
        %834 = vmatprep.subr.mxu0 0.0
        %835 = vmatpush1.xpose.msra.mxu0 0.0
        %836 = vmatprep.subr.mxu0 0.0
        %837 = vmatpush1.xpose.msra.mxu0 0.0
        %838 = vmatprep.subr.mxu0 0.0
        %839 = vmatpush1.xpose.msra.mxu0 0.0
        %840 = vmatprep.subr.mxu0 0.0
        %841 = vmatpush1.xpose.msra.mxu0 0.0
        %842 = vmatprep.subr.mxu0 0.0
        %843 = vmatpush1.xpose.msra.mxu0 0.0
        %844 = vmatprep.subr.mxu0 0.0
        %845 = vmatpush1.xpose.msra.mxu0 0.0
        %846 = vmatprep.subr.mxu0 0.0
        %847 = vmatpush1.xpose.msra.mxu0 0.0
        %848 = vmatprep.subr.mxu0 0.0
        %849 = vmatpush1.xpose.msra.mxu0 0.0
        %850 = vmatprep.subr.mxu0 0.0
        %851 = vmatpush1.xpose.msra.mxu0 0.0
        %852 = vmatprep.mubr.f32.mxu0 0.0
        %853 = vmatmul.mubr.f32.gmra.mrb[0].mxu0 %v784
        %v854 = vpop.f32.mrb[0].mxu0
        %v855 = vadd.f32 0.0, %v854
        %v856 = vpop.f32.mrb[0].mxu0
        %857 = vdwg.mxu0
        %v858 = vmul.f32 %v855, 0.35355338
        %v859 = vsel %vm779, %v858, -inf
        %v860 = vsel %vm783, %v859, -inf
        %861 = vmax.xlane.f32.xlu0 %v860
        %v862 = vpop.xlane.xlu0 %861
        %v863 = vsub.f32 %v859, %v862
        %v864 = vmul.f32 %v863, 1.442695
        %v865 = vpow.pop %v864
        %v866 = vsel %vm783, %v865, 0.0
        %867 = vadd.xlane.f32.xlu0 %v866
        %v868 = vpop.xlane.xlu0 %867
        %v869 = vrcp.pop %v868
        %v870 = vmul.f32 %v865, %v869
        %871 = vrot.lane.b32.xlu0 %v770, 64
        %v872 = vpop.permute.xlu0 %871
        %v875 = vsel %vm783, %v870, 0
        %877 = vmatprep.subr.mxu0 0.0
        %878 = vmatpush1.msra.mxu0 %v872
        %879 = vmatprep.subr.mxu0 0.0
        %880 = vmatpush1.msra.mxu0 0.0
        %881 = vmatprep.subr.mxu0 0.0
        %882 = vmatpush1.msra.mxu0 0.0
        %883 = vmatprep.subr.mxu0 0.0
        %884 = vmatpush1.msra.mxu0 0.0
        %885 = vmatprep.subr.mxu0 0.0
        %886 = vmatpush1.msra.mxu0 0.0
        %887 = vmatprep.subr.mxu0 0.0
        %888 = vmatpush1.msra.mxu0 0.0
        %889 = vmatprep.subr.mxu0 0.0
        %890 = vmatpush1.msra.mxu0 0.0
        %891 = vmatprep.subr.mxu0 0.0
        %892 = vmatpush1.msra.mxu0 0.0
        %893 = vmatprep.subr.mxu0 0.0
        %894 = vmatpush1.msra.mxu0 0.0
        %895 = vmatprep.subr.mxu0 0.0
        %896 = vmatpush1.msra.mxu0 0.0
        %897 = vmatprep.subr.mxu0 0.0
        %898 = vmatpush1.msra.mxu0 0.0
        %899 = vmatprep.subr.mxu0 0.0
        %900 = vmatpush1.msra.mxu0 0.0
        %901 = vmatprep.subr.mxu0 0.0
        %902 = vmatpush1.msra.mxu0 0.0
        %903 = vmatprep.subr.mxu0 0.0
        %904 = vmatpush1.msra.mxu0 0.0
        %905 = vmatprep.subr.mxu0 0.0
        %906 = vmatpush1.msra.mxu0 0.0
        %907 = vmatprep.subr.mxu0 0.0
        %908 = vmatpush1.msra.mxu0 0.0
        %909 = vmatprep.subr.mxu0 0.0
        %910 = vmatpush1.msra.mxu0 0.0
        %911 = vmatprep.subr.mxu0 0.0
        %912 = vmatpush1.msra.mxu0 0.0
        %913 = vmatprep.subr.mxu0 0.0
        %914 = vmatpush1.msra.mxu0 0.0
        %915 = vmatprep.subr.mxu0 0.0
        %916 = vmatpush1.msra.mxu0 0.0
        %917 = vmatprep.subr.mxu0 0.0
        %918 = vmatpush1.msra.mxu0 0.0
        %919 = vmatprep.subr.mxu0 0.0
        %920 = vmatpush1.msra.mxu0 0.0
        %921 = vmatprep.subr.mxu0 0.0
        %922 = vmatpush1.msra.mxu0 0.0
        %923 = vmatprep.subr.mxu0 0.0
        %924 = vmatpush1.msra.mxu0 0.0
        %925 = vmatprep.subr.mxu0 0.0
        %926 = vmatpush1.msra.mxu0 0.0
        %927 = vmatprep.subr.mxu0 0.0
        %928 = vmatpush1.msra.mxu0 0.0
        %929 = vmatprep.subr.mxu0 0.0
        %930 = vmatpush1.msra.mxu0 0.0
        %931 = vmatprep.subr.mxu0 0.0
        %932 = vmatpush1.msra.mxu0 0.0
        %933 = vmatprep.subr.mxu0 0.0
        %934 = vmatpush1.msra.mxu0 0.0
        %935 = vmatprep.subr.mxu0 0.0
        %936 = vmatpush1.msra.mxu0 0.0
        %937 = vmatprep.subr.mxu0 0.0
        %938 = vmatpush1.msra.mxu0 0.0
        %939 = vmatprep.subr.mxu0 0.0
        %940 = vmatpush1.msra.mxu0 0.0
        %941 = vmatprep.mubr.f32.mxu0 0.0
        %942 = vmatmul.mubr.f32.gmra.mrb[0].mxu0 %v875
        %v943 = vpop.f32.mrb[0].mxu0
        %v944 = vadd.f32 0.0, %v943
        %v945 = vpop.f32.mrb[0].mxu0
        %946 = vdwg.mxu0
        %947 = vrot.lane.b32.xlu0 %v770, 120
        %v948 = vpop.permute.xlu0 %947
        %949 = vrot.lane.b32.xlu0 %v770, 88
        %v950 = vpop.permute.xlu0 %949
        %v951 = vsel %vm783, %v948, 0
        %v953 = vsel %vm783, %v950, 0
        %955 = vmatprep.subr.mxu0 0.0
        %956 = vmatpush1.xpose.msra.mxu0 %v953
        %957 = vmatprep.subr.mxu0 0.0
        %958 = vmatpush1.xpose.msra.mxu0 0.0
        %959 = vmatprep.subr.mxu0 0.0
        %960 = vmatpush1.xpose.msra.mxu0 0.0
        %961 = vmatprep.subr.mxu0 0.0
        %962 = vmatpush1.xpose.msra.mxu0 0.0
        %963 = vmatprep.subr.mxu0 0.0
        %964 = vmatpush1.xpose.msra.mxu0 0.0
        %965 = vmatprep.subr.mxu0 0.0
        %966 = vmatpush1.xpose.msra.mxu0 0.0
        %967 = vmatprep.subr.mxu0 0.0
        %968 = vmatpush1.xpose.msra.mxu0 0.0
        %969 = vmatprep.subr.mxu0 0.0
        %970 = vmatpush1.xpose.msra.mxu0 0.0
        %971 = vmatprep.subr.mxu0 0.0
        %972 = vmatpush1.xpose.msra.mxu0 0.0
        %973 = vmatprep.subr.mxu0 0.0
        %974 = vmatpush1.xpose.msra.mxu0 0.0
        %975 = vmatprep.subr.mxu0 0.0
        %976 = vmatpush1.xpose.msra.mxu0 0.0
        %977 = vmatprep.subr.mxu0 0.0
        %978 = vmatpush1.xpose.msra.mxu0 0.0
        %979 = vmatprep.subr.mxu0 0.0
        %980 = vmatpush1.xpose.msra.mxu0 0.0
        %981 = vmatprep.subr.mxu0 0.0
        %982 = vmatpush1.xpose.msra.mxu0 0.0
        %983 = vmatprep.subr.mxu0 0.0
        %984 = vmatpush1.xpose.msra.mxu0 0.0
        %985 = vmatprep.subr.mxu0 0.0
        %986 = vmatpush1.xpose.msra.mxu0 0.0
        %987 = vmatprep.subr.mxu0 0.0
        %988 = vmatpush1.xpose.msra.mxu0 0.0
        %989 = vmatprep.subr.mxu0 0.0
        %990 = vmatpush1.xpose.msra.mxu0 0.0
        %991 = vmatprep.subr.mxu0 0.0
        %992 = vmatpush1.xpose.msra.mxu0 0.0
        %993 = vmatprep.subr.mxu0 0.0
        %994 = vmatpush1.xpose.msra.mxu0 0.0
        %995 = vmatprep.subr.mxu0 0.0
        %996 = vmatpush1.xpose.msra.mxu0 0.0
        %997 = vmatprep.subr.mxu0 0.0
        %998 = vmatpush1.xpose.msra.mxu0 0.0
        %999 = vmatprep.subr.mxu0 0.0
        %1000 = vmatpush1.xpose.msra.mxu0 0.0
        %1001 = vmatprep.subr.mxu0 0.0
        %1002 = vmatpush1.xpose.msra.mxu0 0.0
        %1003 = vmatprep.subr.mxu0 0.0
        %1004 = vmatpush1.xpose.msra.mxu0 0.0
        %1005 = vmatprep.subr.mxu0 0.0
        %1006 = vmatpush1.xpose.msra.mxu0 0.0
        %1007 = vmatprep.subr.mxu0 0.0
        %1008 = vmatpush1.xpose.msra.mxu0 0.0
        %1009 = vmatprep.subr.mxu0 0.0
        %1010 = vmatpush1.xpose.msra.mxu0 0.0
        %1011 = vmatprep.subr.mxu0 0.0
        %1012 = vmatpush1.xpose.msra.mxu0 0.0
        %1013 = vmatprep.subr.mxu0 0.0
        %1014 = vmatpush1.xpose.msra.mxu0 0.0
        %1015 = vmatprep.subr.mxu0 0.0
        %1016 = vmatpush1.xpose.msra.mxu0 0.0
        %1017 = vmatprep.subr.mxu0 0.0
        %1018 = vmatpush1.xpose.msra.mxu0 0.0
        %1019 = vmatprep.mubr.f32.mxu0 0.0
        %1020 = vmatmul.mubr.f32.gmra.mrb[0].mxu0 %v951
        %v1021 = vpop.f32.mrb[0].mxu0
        %v1022 = vadd.f32 0.0, %v1021
        %v1023 = vpop.f32.mrb[0].mxu0
        %1024 = vdwg.mxu0
        %v1025 = vmul.f32 %v1022, 0.35355338
        %v1026 = vsel %vm779, %v1025, -inf
        %v1027 = vsel %vm783, %v1026, -inf
        %1028 = vmax.xlane.f32.xlu0 %v1027
        %v1029 = vpop.xlane.xlu0 %1028
        %v1030 = vsub.f32 %v1026, %v1029
        %v1031 = vmul.f32 %v1030, 1.442695
        %v1032 = vpow.pop %v1031
        %v1033 = vsel %vm783, %v1032, 0.0
        %1034 = vadd.xlane.f32.xlu0 %v1033
        %v1035 = vpop.xlane.xlu0 %1034
        %v1036 = vrcp.pop %v1035
        %v1037 = vmul.f32 %v1032, %v1036
        %1038 = vrot.lane.b32.xlu0 %v770, 56
        %v1039 = vpop.permute.xlu0 %1038
        %v1042 = vsel %vm783, %v1037, 0
        %1044 = vmatprep.subr.mxu0 0.0
        %1045 = vmatpush1.msra.mxu0 %v1039
        %1046 = vmatprep.subr.mxu0 0.0
        %1047 = vmatpush1.msra.mxu0 0.0
        %1048 = vmatprep.subr.mxu0 0.0
        %1049 = vmatpush1.msra.mxu0 0.0
        %1050 = vmatprep.subr.mxu0 0.0
        %1051 = vmatpush1.msra.mxu0 0.0
        %1052 = vmatprep.subr.mxu0 0.0
        %1053 = vmatpush1.msra.mxu0 0.0
        %1054 = vmatprep.subr.mxu0 0.0
        %1055 = vmatpush1.msra.mxu0 0.0
        %1056 = vmatprep.subr.mxu0 0.0
        %1057 = vmatpush1.msra.mxu0 0.0
        %1058 = vmatprep.subr.mxu0 0.0
        %1059 = vmatpush1.msra.mxu0 0.0
        %1060 = vmatprep.subr.mxu0 0.0
        %1061 = vmatpush1.msra.mxu0 0.0
        %1062 = vmatprep.subr.mxu0 0.0
        %1063 = vmatpush1.msra.mxu0 0.0
        %1064 = vmatprep.subr.mxu0 0.0
        %1065 = vmatpush1.msra.mxu0 0.0
        %1066 = vmatprep.subr.mxu0 0.0
        %1067 = vmatpush1.msra.mxu0 0.0
        %1068 = vmatprep.subr.mxu0 0.0
        %1069 = vmatpush1.msra.mxu0 0.0
        %1070 = vmatprep.subr.mxu0 0.0
        %1071 = vmatpush1.msra.mxu0 0.0
        %1072 = vmatprep.subr.mxu0 0.0
        %1073 = vmatpush1.msra.mxu0 0.0
        %1074 = vmatprep.subr.mxu0 0.0
        %1075 = vmatpush1.msra.mxu0 0.0
        %1076 = vmatprep.subr.mxu0 0.0
        %1077 = vmatpush1.msra.mxu0 0.0
        %1078 = vmatprep.subr.mxu0 0.0
        %1079 = vmatpush1.msra.mxu0 0.0
        %1080 = vmatprep.subr.mxu0 0.0
        %1081 = vmatpush1.msra.mxu0 0.0
        %1082 = vmatprep.subr.mxu0 0.0
        %1083 = vmatpush1.msra.mxu0 0.0
        %1084 = vmatprep.subr.mxu0 0.0
        %1085 = vmatpush1.msra.mxu0 0.0
        %1086 = vmatprep.subr.mxu0 0.0
        %1087 = vmatpush1.msra.mxu0 0.0
        %1088 = vmatprep.subr.mxu0 0.0
        %1089 = vmatpush1.msra.mxu0 0.0
        %1090 = vmatprep.subr.mxu0 0.0
        %1091 = vmatpush1.msra.mxu0 0.0
        %1092 = vmatprep.subr.mxu0 0.0
        %1093 = vmatpush1.msra.mxu0 0.0
        %1094 = vmatprep.subr.mxu0 0.0
        %1095 = vmatpush1.msra.mxu0 0.0
        %1096 = vmatprep.subr.mxu0 0.0
        %1097 = vmatpush1.msra.mxu0 0.0
        %1098 = vmatprep.subr.mxu0 0.0
        %1099 = vmatpush1.msra.mxu0 0.0
        %1100 = vmatprep.subr.mxu0 0.0
        %1101 = vmatpush1.msra.mxu0 0.0
        %1102 = vmatprep.subr.mxu0 0.0
        %1103 = vmatpush1.msra.mxu0 0.0
        %1104 = vmatprep.subr.mxu0 0.0
        %1105 = vmatpush1.msra.mxu0 0.0
        %1106 = vmatprep.subr.mxu0 0.0
        %1107 = vmatpush1.msra.mxu0 0.0
        %1108 = vmatprep.mubr.f32.mxu0 0.0
        %1109 = vmatmul.mubr.f32.gmra.mrb[0].mxu0 %v1042
        %v1110 = vpop.f32.mrb[0].mxu0
        %v1111 = vadd.f32 0.0, %v1110
        %v1112 = vpop.f32.mrb[0].mxu0
        %1113 = vdwg.mxu0
        %1114 = vrot.lane.b32.xlu0 %v770, 112
        %v1115 = vpop.permute.xlu0 %1114
        %1116 = vrot.lane.b32.xlu0 %v770, 80
        %v1117 = vpop.permute.xlu0 %1116
        %v1118 = vsel %vm783, %v1115, 0
        %v1120 = vsel %vm783, %v1117, 0
        %1122 = vmatprep.subr.mxu0 0.0
        %1123 = vmatpush1.xpose.msra.mxu0 %v1120
        %1124 = vmatprep.subr.mxu0 0.0
        %1125 = vmatpush1.xpose.msra.mxu0 0.0
        %1126 = vmatprep.subr.mxu0 0.0
        %1127 = vmatpush1.xpose.msra.mxu0 0.0
        %1128 = vmatprep.subr.mxu0 0.0
        %1129 = vmatpush1.xpose.msra.mxu0 0.0
        %1130 = vmatprep.subr.mxu0 0.0
        %1131 = vmatpush1.xpose.msra.mxu0 0.0
        %1132 = vmatprep.subr.mxu0 0.0
        %1133 = vmatpush1.xpose.msra.mxu0 0.0
        %1134 = vmatprep.subr.mxu0 0.0
        %1135 = vmatpush1.xpose.msra.mxu0 0.0
        %1136 = vmatprep.subr.mxu0 0.0
        %1137 = vmatpush1.xpose.msra.mxu0 0.0
        %1138 = vmatprep.subr.mxu0 0.0
        %1139 = vmatpush1.xpose.msra.mxu0 0.0
        %1140 = vmatprep.subr.mxu0 0.0
        %1141 = vmatpush1.xpose.msra.mxu0 0.0
        %1142 = vmatprep.subr.mxu0 0.0
        %1143 = vmatpush1.xpose.msra.mxu0 0.0
        %1144 = vmatprep.subr.mxu0 0.0
        %1145 = vmatpush1.xpose.msra.mxu0 0.0
        %1146 = vmatprep.subr.mxu0 0.0
        %1147 = vmatpush1.xpose.msra.mxu0 0.0
        %1148 = vmatprep.subr.mxu0 0.0
        %1149 = vmatpush1.xpose.msra.mxu0 0.0
        %1150 = vmatprep.subr.mxu0 0.0
        %1151 = vmatpush1.xpose.msra.mxu0 0.0
        %1152 = vmatprep.subr.mxu0 0.0
        %1153 = vmatpush1.xpose.msra.mxu0 0.0
        %1154 = vmatprep.subr.mxu0 0.0
        %1155 = vmatpush1.xpose.msra.mxu0 0.0
        %1156 = vmatprep.subr.mxu0 0.0
        %1157 = vmatpush1.xpose.msra.mxu0 0.0
        %1158 = vmatprep.subr.mxu0 0.0
        %1159 = vmatpush1.xpose.msra.mxu0 0.0
        %1160 = vmatprep.subr.mxu0 0.0
        %1161 = vmatpush1.xpose.msra.mxu0 0.0
        %1162 = vmatprep.subr.mxu0 0.0
        %1163 = vmatpush1.xpose.msra.mxu0 0.0
        %1164 = vmatprep.subr.mxu0 0.0
        %1165 = vmatpush1.xpose.msra.mxu0 0.0
        %1166 = vmatprep.subr.mxu0 0.0
        %1167 = vmatpush1.xpose.msra.mxu0 0.0
        %1168 = vmatprep.subr.mxu0 0.0
        %1169 = vmatpush1.xpose.msra.mxu0 0.0
        %1170 = vmatprep.subr.mxu0 0.0
        %1171 = vmatpush1.xpose.msra.mxu0 0.0
        %1172 = vmatprep.subr.mxu0 0.0
        %1173 = vmatpush1.xpose.msra.mxu0 0.0
        %1174 = vmatprep.subr.mxu0 0.0
        %1175 = vmatpush1.xpose.msra.mxu0 0.0
        %1176 = vmatprep.subr.mxu0 0.0
        %1177 = vmatpush1.xpose.msra.mxu0 0.0
        %1178 = vmatprep.subr.mxu0 0.0
        %1179 = vmatpush1.xpose.msra.mxu0 0.0
        %1180 = vmatprep.subr.mxu0 0.0
        %1181 = vmatpush1.xpose.msra.mxu0 0.0
        %1182 = vmatprep.subr.mxu0 0.0
        %1183 = vmatpush1.xpose.msra.mxu0 0.0
        %1184 = vmatprep.subr.mxu0 0.0
        %1185 = vmatpush1.xpose.msra.mxu0 0.0
        %1186 = vmatprep.mubr.f32.mxu0 0.0
        %1187 = vmatmul.mubr.f32.gmra.mrb[0].mxu0 %v1118
        %v1188 = vpop.f32.mrb[0].mxu0
        %v1189 = vadd.f32 0.0, %v1188
        %v1190 = vpop.f32.mrb[0].mxu0
        %1191 = vdwg.mxu0
        %v1192 = vmul.f32 %v1189, 0.35355338
        %v1193 = vsel %vm779, %v1192, -inf
        %v1194 = vsel %vm783, %v1193, -inf
        %1195 = vmax.xlane.f32.xlu0 %v1194
        %v1196 = vpop.xlane.xlu0 %1195
        %v1197 = vsub.f32 %v1193, %v1196
        %v1198 = vmul.f32 %v1197, 1.442695
        %v1199 = vpow.pop %v1198
        %v1200 = vsel %vm783, %v1199, 0.0
        %1201 = vadd.xlane.f32.xlu0 %v1200
        %v1202 = vpop.xlane.xlu0 %1201
        %v1203 = vrcp.pop %v1202
        %v1204 = vmul.f32 %v1199, %v1203
        %1205 = vrot.lane.b32.xlu0 %v770, 48
        %v1206 = vpop.permute.xlu0 %1205
        %v1209 = vsel %vm783, %v1204, 0
        %1211 = vmatprep.subr.mxu0 0.0
        %1212 = vmatpush1.msra.mxu0 %v1206
        %1213 = vmatprep.subr.mxu0 0.0
        %1214 = vmatpush1.msra.mxu0 0.0
        %1215 = vmatprep.subr.mxu0 0.0
        %1216 = vmatpush1.msra.mxu0 0.0
        %1217 = vmatprep.subr.mxu0 0.0
        %1218 = vmatpush1.msra.mxu0 0.0
        %1219 = vmatprep.subr.mxu0 0.0
        %1220 = vmatpush1.msra.mxu0 0.0
        %1221 = vmatprep.subr.mxu0 0.0
        %1222 = vmatpush1.msra.mxu0 0.0
        %1223 = vmatprep.subr.mxu0 0.0
        %1224 = vmatpush1.msra.mxu0 0.0
        %1225 = vmatprep.subr.mxu0 0.0
        %1226 = vmatpush1.msra.mxu0 0.0
        %1227 = vmatprep.subr.mxu0 0.0
        %1228 = vmatpush1.msra.mxu0 0.0
        %1229 = vmatprep.subr.mxu0 0.0
        %1230 = vmatpush1.msra.mxu0 0.0
        %1231 = vmatprep.subr.mxu0 0.0
        %1232 = vmatpush1.msra.mxu0 0.0
        %1233 = vmatprep.subr.mxu0 0.0
        %1234 = vmatpush1.msra.mxu0 0.0
        %1235 = vmatprep.subr.mxu0 0.0
        %1236 = vmatpush1.msra.mxu0 0.0
        %1237 = vmatprep.subr.mxu0 0.0
        %1238 = vmatpush1.msra.mxu0 0.0
        %1239 = vmatprep.subr.mxu0 0.0
        %1240 = vmatpush1.msra.mxu0 0.0
        %1241 = vmatprep.subr.mxu0 0.0
        %1242 = vmatpush1.msra.mxu0 0.0
        %1243 = vmatprep.subr.mxu0 0.0
        %1244 = vmatpush1.msra.mxu0 0.0
        %1245 = vmatprep.subr.mxu0 0.0
        %1246 = vmatpush1.msra.mxu0 0.0
        %1247 = vmatprep.subr.mxu0 0.0
        %1248 = vmatpush1.msra.mxu0 0.0
        %1249 = vmatprep.subr.mxu0 0.0
        %1250 = vmatpush1.msra.mxu0 0.0
        %1251 = vmatprep.subr.mxu0 0.0
        %1252 = vmatpush1.msra.mxu0 0.0
        %1253 = vmatprep.subr.mxu0 0.0
        %1254 = vmatpush1.msra.mxu0 0.0
        %1255 = vmatprep.subr.mxu0 0.0
        %1256 = vmatpush1.msra.mxu0 0.0
        %1257 = vmatprep.subr.mxu0 0.0
        %1258 = vmatpush1.msra.mxu0 0.0
        %1259 = vmatprep.subr.mxu0 0.0
        %1260 = vmatpush1.msra.mxu0 0.0
        %1261 = vmatprep.subr.mxu0 0.0
        %1262 = vmatpush1.msra.mxu0 0.0
        %1263 = vmatprep.subr.mxu0 0.0
        %1264 = vmatpush1.msra.mxu0 0.0
        %1265 = vmatprep.subr.mxu0 0.0
        %1266 = vmatpush1.msra.mxu0 0.0
        %1267 = vmatprep.subr.mxu0 0.0
        %1268 = vmatpush1.msra.mxu0 0.0
        %1269 = vmatprep.subr.mxu0 0.0
        %1270 = vmatpush1.msra.mxu0 0.0
        %1271 = vmatprep.subr.mxu0 0.0
        %1272 = vmatpush1.msra.mxu0 0.0
        %1273 = vmatprep.subr.mxu0 0.0
        %1274 = vmatpush1.msra.mxu0 0.0
        %1275 = vmatprep.mubr.f32.mxu0 0.0
        %1276 = vmatmul.mubr.f32.gmra.mrb[0].mxu0 %v1209
        %v1277 = vpop.f32.mrb[0].mxu0
        %v1278 = vadd.f32 0.0, %v1277
        %v1279 = vpop.f32.mrb[0].mxu0
        %1280 = vdwg.mxu0
        %1281 = vrot.lane.b32.xlu0 %v770, 104
        %v1282 = vpop.permute.xlu0 %1281
        %1283 = vrot.lane.b32.xlu0 %v770, 72
        %v1284 = vpop.permute.xlu0 %1283
        %v1285 = vsel %vm783, %v1282, 0
        %v1287 = vsel %vm783, %v1284, 0
        %1289 = vmatprep.subr.mxu0 0.0
        %1290 = vmatpush1.xpose.msra.mxu0 %v1287
        %1291 = vmatprep.subr.mxu0 0.0
        %1292 = vmatpush1.xpose.msra.mxu0 0.0
        %1293 = vmatprep.subr.mxu0 0.0
        %1294 = vmatpush1.xpose.msra.mxu0 0.0
        %1295 = vmatprep.subr.mxu0 0.0
        %1296 = vmatpush1.xpose.msra.mxu0 0.0
        %1297 = vmatprep.subr.mxu0 0.0
        %1298 = vmatpush1.xpose.msra.mxu0 0.0
        %1299 = vmatprep.subr.mxu0 0.0
        %1300 = vmatpush1.xpose.msra.mxu0 0.0
        %1301 = vmatprep.subr.mxu0 0.0
        %1302 = vmatpush1.xpose.msra.mxu0 0.0
        %1303 = vmatprep.subr.mxu0 0.0
        %1304 = vmatpush1.xpose.msra.mxu0 0.0
        %1305 = vmatprep.subr.mxu0 0.0
        %1306 = vmatpush1.xpose.msra.mxu0 0.0
        %1307 = vmatprep.subr.mxu0 0.0
        %1308 = vmatpush1.xpose.msra.mxu0 0.0
        %1309 = vmatprep.subr.mxu0 0.0
        %1310 = vmatpush1.xpose.msra.mxu0 0.0
        %1311 = vmatprep.subr.mxu0 0.0
        %1312 = vmatpush1.xpose.msra.mxu0 0.0
        %1313 = vmatprep.subr.mxu0 0.0
        %1314 = vmatpush1.xpose.msra.mxu0 0.0
        %1315 = vmatprep.subr.mxu0 0.0
        %1316 = vmatpush1.xpose.msra.mxu0 0.0
        %1317 = vmatprep.subr.mxu0 0.0
        %1318 = vmatpush1.xpose.msra.mxu0 0.0
        %1319 = vmatprep.subr.mxu0 0.0
        %1320 = vmatpush1.xpose.msra.mxu0 0.0
        %1321 = vmatprep.subr.mxu0 0.0
        %1322 = vmatpush1.xpose.msra.mxu0 0.0
        %1323 = vmatprep.subr.mxu0 0.0
        %1324 = vmatpush1.xpose.msra.mxu0 0.0
        %1325 = vmatprep.subr.mxu0 0.0
        %1326 = vmatpush1.xpose.msra.mxu0 0.0
        %1327 = vmatprep.subr.mxu0 0.0
        %1328 = vmatpush1.xpose.msra.mxu0 0.0
        %1329 = vmatprep.subr.mxu0 0.0
        %1330 = vmatpush1.xpose.msra.mxu0 0.0
        %1331 = vmatprep.subr.mxu0 0.0
        %1332 = vmatpush1.xpose.msra.mxu0 0.0
        %1333 = vmatprep.subr.mxu0 0.0
        %1334 = vmatpush1.xpose.msra.mxu0 0.0
        %1335 = vmatprep.subr.mxu0 0.0
        %1336 = vmatpush1.xpose.msra.mxu0 0.0
        %1337 = vmatprep.subr.mxu0 0.0
        %1338 = vmatpush1.xpose.msra.mxu0 0.0
        %1339 = vmatprep.subr.mxu0 0.0
        %1340 = vmatpush1.xpose.msra.mxu0 0.0
        %1341 = vmatprep.subr.mxu0 0.0
        %1342 = vmatpush1.xpose.msra.mxu0 0.0
        %1343 = vmatprep.subr.mxu0 0.0
        %1344 = vmatpush1.xpose.msra.mxu0 0.0
        %1345 = vmatprep.subr.mxu0 0.0
        %1346 = vmatpush1.xpose.msra.mxu0 0.0
        %1347 = vmatprep.subr.mxu0 0.0
        %1348 = vmatpush1.xpose.msra.mxu0 0.0
        %1349 = vmatprep.subr.mxu0 0.0
        %1350 = vmatpush1.xpose.msra.mxu0 0.0
        %1351 = vmatprep.subr.mxu0 0.0
        %1352 = vmatpush1.xpose.msra.mxu0 0.0
        %1353 = vmatprep.mubr.f32.mxu0 0.0
        %1354 = vmatmul.mubr.f32.gmra.mrb[0].mxu0 %v1285
        %v1355 = vpop.f32.mrb[0].mxu0
        %v1356 = vadd.f32 0.0, %v1355
        %v1357 = vpop.f32.mrb[0].mxu0
        %1358 = vdwg.mxu0
        %v1359 = vmul.f32 %v1356, 0.35355338
        %v1360 = vsel %vm779, %v1359, -inf
        %v1361 = vsel %vm783, %v1360, -inf
        %1362 = vmax.xlane.f32.xlu0 %v1361
        %v1363 = vpop.xlane.xlu0 %1362
        %v1364 = vsub.f32 %v1360, %v1363
        %v1365 = vmul.f32 %v1364, 1.442695
        %v1366 = vpow.pop %v1365
        %v1367 = vsel %vm783, %v1366, 0.0
        %1368 = vadd.xlane.f32.xlu0 %v1367
        %v1369 = vpop.xlane.xlu0 %1368
        %v1370 = vrcp.pop %v1369
        %v1371 = vmul.f32 %v1366, %v1370
        %1372 = vrot.lane.b32.xlu0 %v770, 40
        %v1373 = vpop.permute.xlu0 %1372
        %v1376 = vsel %vm783, %v1371, 0
        %1378 = vmatprep.subr.mxu0 0.0
        %1379 = vmatpush1.msra.mxu0 %v1373
        %1380 = vmatprep.subr.mxu0 0.0
        %1381 = vmatpush1.msra.mxu0 0.0
        %1382 = vmatprep.subr.mxu0 0.0
        %1383 = vmatpush1.msra.mxu0 0.0
        %1384 = vmatprep.subr.mxu0 0.0
        %1385 = vmatpush1.msra.mxu0 0.0
        %1386 = vmatprep.subr.mxu0 0.0
        %1387 = vmatpush1.msra.mxu0 0.0
        %1388 = vmatprep.subr.mxu0 0.0
        %1389 = vmatpush1.msra.mxu0 0.0
        %1390 = vmatprep.subr.mxu0 0.0
        %1391 = vmatpush1.msra.mxu0 0.0
        %1392 = vmatprep.subr.mxu0 0.0
        %1393 = vmatpush1.msra.mxu0 0.0
        %1394 = vmatprep.subr.mxu0 0.0
        %1395 = vmatpush1.msra.mxu0 0.0
        %1396 = vmatprep.subr.mxu0 0.0
        %1397 = vmatpush1.msra.mxu0 0.0
        %1398 = vmatprep.subr.mxu0 0.0
        %1399 = vmatpush1.msra.mxu0 0.0
        %1400 = vmatprep.subr.mxu0 0.0
        %1401 = vmatpush1.msra.mxu0 0.0
        %1402 = vmatprep.subr.mxu0 0.0
        %1403 = vmatpush1.msra.mxu0 0.0
        %1404 = vmatprep.subr.mxu0 0.0
        %1405 = vmatpush1.msra.mxu0 0.0
        %1406 = vmatprep.subr.mxu0 0.0
        %1407 = vmatpush1.msra.mxu0 0.0
        %1408 = vmatprep.subr.mxu0 0.0
        %1409 = vmatpush1.msra.mxu0 0.0
        %1410 = vmatprep.subr.mxu0 0.0
        %1411 = vmatpush1.msra.mxu0 0.0
        %1412 = vmatprep.subr.mxu0 0.0
        %1413 = vmatpush1.msra.mxu0 0.0
        %1414 = vmatprep.subr.mxu0 0.0
        %1415 = vmatpush1.msra.mxu0 0.0
        %1416 = vmatprep.subr.mxu0 0.0
        %1417 = vmatpush1.msra.mxu0 0.0
        %1418 = vmatprep.subr.mxu0 0.0
        %1419 = vmatpush1.msra.mxu0 0.0
        %1420 = vmatprep.subr.mxu0 0.0
        %1421 = vmatpush1.msra.mxu0 0.0
        %1422 = vmatprep.subr.mxu0 0.0
        %1423 = vmatpush1.msra.mxu0 0.0
        %1424 = vmatprep.subr.mxu0 0.0
        %1425 = vmatpush1.msra.mxu0 0.0
        %1426 = vmatprep.subr.mxu0 0.0
        %1427 = vmatpush1.msra.mxu0 0.0
        %1428 = vmatprep.subr.mxu0 0.0
        %1429 = vmatpush1.msra.mxu0 0.0
        %1430 = vmatprep.subr.mxu0 0.0
        %1431 = vmatpush1.msra.mxu0 0.0
        %1432 = vmatprep.subr.mxu0 0.0
        %1433 = vmatpush1.msra.mxu0 0.0
        %1434 = vmatprep.subr.mxu0 0.0
        %1435 = vmatpush1.msra.mxu0 0.0
        %1436 = vmatprep.subr.mxu0 0.0
        %1437 = vmatpush1.msra.mxu0 0.0
        %1438 = vmatprep.subr.mxu0 0.0
        %1439 = vmatpush1.msra.mxu0 0.0
        %1440 = vmatprep.subr.mxu0 0.0
        %1441 = vmatpush1.msra.mxu0 0.0
        %1442 = vmatprep.mubr.f32.mxu0 0.0
        %1443 = vmatmul.mubr.f32.gmra.mrb[0].mxu0 %v1376
        %v1444 = vpop.f32.mrb[0].mxu0
        %v1445 = vadd.f32 0.0, %v1444
        %v1446 = vpop.f32.mrb[0].mxu0
        %1447 = vdwg.mxu0
        %1449 = vrot.lane.b32.xlu0 %v1111, 8
        %v1450 = vpop.permute.xlu0 %1449
        %1453 = vrot.lane.b32.xlu0 %v1278, 16
        %v1454 = vpop.permute.xlu0 %1453
        %1457 = vrot.lane.b32.xlu0 %v1445, 24
        %v1458 = vpop.permute.xlu0 %1457
        %v1460 = vsel %vm783, %v944, %v1450
        %vm1461 = vcmask 130048
        %v1462 = vsel %vm1461, %v1460, %v1454
        %vm1463 = vcmask 195584
        %v1464 = vsel %vm1463, %v1462, %v1458
        %v1465 = vld [vmem:[%s567] sm:$0xf]
        %v1466 = vld [vmem:[%s567 + $0x4] sm:$0xf]
        %v1467 = vld [vmem:[%s567 + $0x8] sm:$0xf]
        %v1468 = vld [vmem:[%s567 + $0xc] sm:$0xf]
        %v1469 = vpack.c.bf16 %v1464, %v1464
        %v1474 = vunpack.c.l.b16 %v1465
        %v1475 = vunpack.c.l.b16 %v1466
        %v1476 = vunpack.c.l.b16 %v1467
        %v1477 = vunpack.c.l.b16 %v1468
        %v1478 = vpack.c.b16 %v1475, %v1474
        %v1479 = vpack.c.b16 %v1477, %v1476
        %v1483 = vsel %vm683, %v1469, 0
        %1485 = vmatprep.subr.bf16.mxu0 0
        %1486 = vmatpush1.bf16.msra.mxu0 %v1478
        %1487 = vmatprep.subr.bf16.mxu0 0
        %1488 = vmatpush1.bf16.msra.mxu0 %v1479
        %1489 = vmatprep.subr.bf16.mxu0 0
        %1490 = vmatpush1.bf16.msra.mxu0 0
        %1491 = vmatprep.subr.bf16.mxu0 0
        %1492 = vmatpush1.bf16.msra.mxu0 0
        %1493 = vmatprep.subr.bf16.mxu0 0
        %1494 = vmatpush1.bf16.msra.mxu0 0
        %1495 = vmatprep.subr.bf16.mxu0 0
        %1496 = vmatpush1.bf16.msra.mxu0 0
        %1497 = vmatprep.subr.bf16.mxu0 0
        %1498 = vmatpush1.bf16.msra.mxu0 0
        %1499 = vmatprep.subr.bf16.mxu0 0
        %1500 = vmatpush1.bf16.msra.mxu0 0
        %1501 = vmatprep.subr.bf16.mxu0 0
        %1502 = vmatpush1.bf16.msra.mxu0 0
        %1503 = vmatprep.subr.bf16.mxu0 0
        %1504 = vmatpush1.bf16.msra.mxu0 0
        %1505 = vmatprep.subr.bf16.mxu0 0
        %1506 = vmatpush1.bf16.msra.mxu0 0
        %1507 = vmatprep.subr.bf16.mxu0 0
        %1508 = vmatpush1.bf16.msra.mxu0 0
        %1509 = vmatprep.subr.bf16.mxu0 0
        %1510 = vmatpush1.bf16.msra.mxu0 0
        %1511 = vmatprep.subr.bf16.mxu0 0
        %1512 = vmatpush1.bf16.msra.mxu0 0
        %1513 = vmatprep.subr.bf16.mxu0 0
        %1514 = vmatpush1.bf16.msra.mxu0 0
        %1515 = vmatprep.subr.bf16.mxu0 0
        %1516 = vmatpush1.bf16.msra.mxu0 0
        %1517 = vmatprep.mubr.bf16.mxu0 0
        %1518 = vmatmul.mubr.bf16.gmra.mrb[0].mxu0 %v1483
        %v1519 = vpop.f32.mrb[0].mxu0
        %v1520 = vadd.f32 0.0, %v1519
        %v1521 = vpop.f32.mrb[0].mxu0
        %v1522 = vpop.f32.mrb[0].mxu0
        %v1523 = vpop.f32.mrb[0].mxu0
        %1524 = vdwg.mxu0
        %v1525 = vadd.f32 %v681, %v1520
        %v1526 = vld [vmem:[%s570] sm:$0x1]
        %v1528 = vlaneseq
        %v1529 = vshrl.u32 %v1528, 7
        %v1530 = vsub.s32 0, %v1529
        %v1531 = vrot.slane %v1526, %v1530
        %v1533 = vadd.f32 %v1525, %v1531
        %v1534 = vsel %vm683, %v1533, 0.0
        %1535 = vadd.xlane.f32.xlu0 %v1534
        %v1536 = vpop.xlane.xlu0 %1535
        %v1537 = vmul.f32 %v1536, %v687
        %v1538 = vsub.f32 %v1533, %v1537
        %v1539 = vmul.f32 %v1538, %v1538
        %v1540 = vsel %vm683, %v1539, 0.0
        %1541 = vadd.xlane.f32.xlu0 %v1540
        %v1542 = vpop.xlane.xlu0 %1541
        %v1543 = vmul.f32 %v1542, %v687
        %v1544 = vadd.f32 %v1543, 1e-05
        %v1545 = vrsqrt.pop %v1544
        %v1546 = vmul.f32 %v1538, %v1545
        %v1547 = vlaneseq
        %v1548 = vshrl.u32 %v1547, 7
        %v1549 = vsub.s32 2, %v1548
        %v1550 = vrot.slane %v682, %v1549
        %v1551 = vmul.f32 %v1546, %v1550
        %v1552 = vlaneseq
        %v1553 = vshrl.u32 %v1552, 7
        %v1554 = vsub.s32 3, %v1553
        %v1555 = vrot.slane %v682, %v1554
        %v1556 = vadd.f32 %v1551, %v1555
        %v1557 = vld [vmem:[%s575] sm:$0xf]
        %v1558 = vld [vmem:[%s575 + $0x4] sm:$0xf]
        %v1559 = vld [vmem:[%s575 + $0x8] sm:$0xf]
        %v1560 = vld [vmem:[%s575 + $0xc] sm:$0xf]
        %v1561 = vpack.c.bf16 %v1556, %v1556
        %v1562 = vld [vmem:[%s578] sm:$0x1]
        %v1564 = vlaneseq
        %v1565 = vshrl.u32 %v1564, 7
        %v1566 = vsub.s32 0, %v1565
        %v1567 = vrot.slane %v1562, %v1566
        %v1573 = vunpack.c.l.b16 %v1557
        %v1574 = vunpack.c.l.b16 %v1558
        %v1575 = vunpack.c.l.b16 %v1559
        %v1576 = vunpack.c.l.b16 %v1560
        %v1577 = vpack.c.b16 %v1574, %v1573
        %v1578 = vpack.c.b16 %v1576, %v1575
        %v1582 = vsel %vm683, %v1561, 0
        %1584 = vmatprep.subr.bf16.mxu0 0
        %1585 = vmatpush1.bf16.msra.mxu0 %v1577
        %1586 = vmatprep.subr.bf16.mxu0 0
        %1587 = vmatpush1.bf16.msra.mxu0 %v1578
        %1588 = vmatprep.subr.bf16.mxu0 0
        %1589 = vmatpush1.bf16.msra.mxu0 0
        %1590 = vmatprep.subr.bf16.mxu0 0
        %1591 = vmatpush1.bf16.msra.mxu0 0
        %1592 = vmatprep.subr.bf16.mxu0 0
        %1593 = vmatpush1.bf16.msra.mxu0 0
        %1594 = vmatprep.subr.bf16.mxu0 0
        %1595 = vmatpush1.bf16.msra.mxu0 0
        %1596 = vmatprep.subr.bf16.mxu0 0
        %1597 = vmatpush1.bf16.msra.mxu0 0
        %1598 = vmatprep.subr.bf16.mxu0 0
        %1599 = vmatpush1.bf16.msra.mxu0 0
        %1600 = vmatprep.subr.bf16.mxu0 0
        %1601 = vmatpush1.bf16.msra.mxu0 0
        %1602 = vmatprep.subr.bf16.mxu0 0
        %1603 = vmatpush1.bf16.msra.mxu0 0
        %1604 = vmatprep.subr.bf16.mxu0 0
        %1605 = vmatpush1.bf16.msra.mxu0 0
        %1606 = vmatprep.subr.bf16.mxu0 0
        %1607 = vmatpush1.bf16.msra.mxu0 0
        %1608 = vmatprep.subr.bf16.mxu0 0
        %1609 = vmatpush1.bf16.msra.mxu0 0
        %1610 = vmatprep.subr.bf16.mxu0 0
        %1611 = vmatpush1.bf16.msra.mxu0 0
        %1612 = vmatprep.subr.bf16.mxu0 0
        %1613 = vmatpush1.bf16.msra.mxu0 0
        %1614 = vmatprep.subr.bf16.mxu0 0
        %1615 = vmatpush1.bf16.msra.mxu0 0
        %1616 = vmatprep.mubr.bf16.mxu0 0
        %1617 = vmatmul.mubr.bf16.gmra.mrb[0].mxu0 %v1582
        %v1618 = vpop.f32.mrb[0].mxu0
        %v1619 = vadd.f32 %v1567, %v1618
        %v1620 = vpop.f32.mrb[0].mxu0
        %v1621 = vpop.f32.mrb[0].mxu0
        %v1622 = vpop.f32.mrb[0].mxu0
        %1623 = vdwg.mxu0
        %v1624 = vmul.f32 %v1619, 0.5
        %v1625 = vmul.f32 %v1619, 0.044715
        %v1626 = vmul.f32 %v1625, %v1619
        %v1627 = vmul.f32 %v1626, %v1619
        %v1628 = vadd.f32 %v1619, %v1627
        %v1629 = vmul.f32 %v1628, 0.7978846
        %v1630 = vtanh.pop %v1629
        %v1631 = vadd.f32 %v1630, 1.0
        %v1632 = vmul.f32 %v1624, %v1631
        %v1633 = vld [vmem:[%s583] sm:$0xf]
        %v1634 = vld [vmem:[%s583 + $0x4] sm:$0xf]
        %v1635 = vld [vmem:[%s583 + $0x8] sm:$0xf]
        %v1636 = vld [vmem:[%s583 + $0xc] sm:$0xf]
        %v1637 = vld [vmem:[%s583 + $0x10] sm:$0xf]
        %v1638 = vld [vmem:[%s583 + $0x14] sm:$0xf]
        %v1639 = vld [vmem:[%s583 + $0x18] sm:$0xf]
        %v1640 = vld [vmem:[%s583 + $0x1c] sm:$0xf]
        %v1641 = vld [vmem:[%s583 + $0x20] sm:$0xf]
        %v1642 = vld [vmem:[%s583 + $0x24] sm:$0xf]
        %v1643 = vld [vmem:[%s583 + $0x28] sm:$0xf]
        %v1644 = vld [vmem:[%s583 + $0x2c] sm:$0xf]
        %v1645 = vld [vmem:[%s583 + $0x30] sm:$0xf]
        %v1646 = vld [vmem:[%s583 + $0x34] sm:$0xf]
        %v1647 = vld [vmem:[%s583 + $0x38] sm:$0xf]
        %v1648 = vld [vmem:[%s583 + $0x3c] sm:$0xf]
        %v1649 = vpack.c.bf16 %v1632, %v1632
        %v1666 = vunpack.c.l.b16 %v1633
        %v1667 = vunpack.c.l.b16 %v1634
        %v1668 = vunpack.c.l.b16 %v1635
        %v1669 = vunpack.c.l.b16 %v1636
        %v1670 = vunpack.c.l.b16 %v1637
        %v1671 = vunpack.c.l.b16 %v1638
        %v1672 = vunpack.c.l.b16 %v1639
        %v1673 = vunpack.c.l.b16 %v1640
        %v1674 = vunpack.c.l.b16 %v1641
        %v1675 = vunpack.c.l.b16 %v1642
        %v1676 = vunpack.c.l.b16 %v1643
        %v1677 = vunpack.c.l.b16 %v1644
        %v1678 = vunpack.c.l.b16 %v1645
        %v1679 = vunpack.c.l.b16 %v1646
        %v1680 = vunpack.c.l.b16 %v1647
        %v1681 = vunpack.c.l.b16 %v1648
        %v1682 = vpack.c.b16 %v1667, %v1666
        %v1683 = vpack.c.b16 %v1669, %v1668
        %v1684 = vpack.c.b16 %v1671, %v1670
        %v1685 = vpack.c.b16 %v1673, %v1672
        %v1686 = vpack.c.b16 %v1675, %v1674
        %v1687 = vpack.c.b16 %v1677, %v1676
        %v1688 = vpack.c.b16 %v1679, %v1678
        %v1689 = vpack.c.b16 %v1681, %v1680
        %1698 = vmatprep.subr.bf16.mxu0 0
        %1699 = vmatpush1.bf16.msra.mxu0 %v1682
        %1700 = vmatprep.subr.bf16.mxu0 0
        %1701 = vmatpush1.bf16.msra.mxu0 %v1683
        %1702 = vmatprep.subr.bf16.mxu0 0
        %1703 = vmatpush1.bf16.msra.mxu0 %v1684
        %1704 = vmatprep.subr.bf16.mxu0 0
        %1705 = vmatpush1.bf16.msra.mxu0 %v1685
        %1706 = vmatprep.subr.bf16.mxu0 0
        %1707 = vmatpush1.bf16.msra.mxu0 %v1686
        %1708 = vmatprep.subr.bf16.mxu0 0
        %1709 = vmatpush1.bf16.msra.mxu0 %v1687
        %1710 = vmatprep.subr.bf16.mxu0 0
        %1711 = vmatpush1.bf16.msra.mxu0 %v1688
        %1712 = vmatprep.subr.bf16.mxu0 0
        %1713 = vmatpush1.bf16.msra.mxu0 %v1689
        %1714 = vmatprep.subr.bf16.mxu0 0
        %1715 = vmatpush1.bf16.msra.mxu0 0
        %1716 = vmatprep.subr.bf16.mxu0 0
        %1717 = vmatpush1.bf16.msra.mxu0 0
        %1718 = vmatprep.subr.bf16.mxu0 0
        %1719 = vmatpush1.bf16.msra.mxu0 0
        %1720 = vmatprep.subr.bf16.mxu0 0
        %1721 = vmatpush1.bf16.msra.mxu0 0
        %1722 = vmatprep.subr.bf16.mxu0 0
        %1723 = vmatpush1.bf16.msra.mxu0 0
        %1724 = vmatprep.subr.bf16.mxu0 0
        %1725 = vmatpush1.bf16.msra.mxu0 0
        %1726 = vmatprep.subr.bf16.mxu0 0
        %1727 = vmatpush1.bf16.msra.mxu0 0
        %1728 = vmatprep.subr.bf16.mxu0 0
        %1729 = vmatpush1.bf16.msra.mxu0 0
        %1730 = vmatprep.mubr.bf16.mxu0 0
        %1731 = vmatmul.mubr.bf16.gmra.mrb[0].mxu0 %v1649
        %v1732 = vpop.f32.mrb[0].mxu0
        %v1733 = vadd.f32 0.0, %v1732
        %v1734 = vpop.f32.mrb[0].mxu0
        %v1735 = vpop.f32.mrb[0].mxu0
        %v1736 = vpop.f32.mrb[0].mxu0
        %1737 = vdwg.mxu0
        %v1738 = vadd.f32 %v1533, %v1733
        %v1739 = vld [vmem:[%s586] sm:$0x1]
        %v1741 = vlaneseq
        %v1742 = vshrl.u32 %v1741, 7
        %v1743 = vsub.s32 0, %v1742
        %v1744 = vrot.slane %v1739, %v1743
        %v1746 = vadd.f32 %v1738, %v1744
        %1747 = vst.msk [vmem:[#allocation2] sm:$0xff] %vm683, %v1746
        %p1748 = scmp.eq.s32.totalorder %s26, 1
        // Predicated region
        $region81: #{cag_gpt_forward_loss.1} parent=75 // pred_check
          %p1749 = pneg %p1748
        $region82: #{cag_gpt_forward_loss.1} parent=75 // pred_check_branch
          %1751 = sbr.rel (%p1749) target = $region84
        $region83: #{cag_gpt_forward_loss.1} parent=75 // pred_region
          %v1752 = vld [vmem:[%s13] sm:$0x3]
          %v1753 = vsel %vm683, %v1746, 0.0
          %1754 = vadd.xlane.f32.xlu0 %v1753
          %v1755 = vpop.xlane.xlu0 %1754
          %v1756 = vmul.f32 %v1755, %v687
          %v1757 = vsub.f32 %v1746, %v1756
          %v1758 = vmul.f32 %v1757, %v1757
          %v1759 = vsel %vm683, %v1758, 0.0
          %1760 = vadd.xlane.f32.xlu0 %v1759
          %v1761 = vpop.xlane.xlu0 %1760
          %v1762 = vmul.f32 %v1761, %v687
          %v1763 = vadd.f32 %v1762, 1e-05
          %v1764 = vrsqrt.pop %v1763
          %v1765 = vmul.f32 %v1757, %v1764
          %v1766 = vlaneseq
          %v1767 = vshrl.u32 %v1766, 7
          %v1768 = vsub.s32 0, %v1767
          %v1769 = vrot.slane %v1752, %v1768
          %v1770 = vmul.f32 %v1765, %v1769
          %v1771 = vlaneseq
          %v1772 = vshrl.u32 %v1771, 7
          %v1773 = vsub.s32 1, %v1772
          %v1774 = vrot.slane %v1752, %v1773
          %v1775 = vadd.f32 %v1770, %v1774
          %v1776 = vpack.c.bf16 %v1775, %v1775
          %v1777 = vld [vmem:[%s2] sm:$0xf]
          %v1778 = vld [vmem:[%s2 + $0x4] sm:$0xf]
          %v1779 = vld [vmem:[%s2 + $0x8] sm:$0xf]
          %v1780 = vld [vmem:[%s2 + $0xc] sm:$0xf]
          %v1781 = vld [vmem:[%s2 + $0x10] sm:$0xf]
          %v1782 = vld [vmem:[%s2 + $0x14] sm:$0xf]
          %v1783 = vld [vmem:[%s2 + $0x18] sm:$0xf]
          %v1784 = vld [vmem:[%s2 + $0x1c] sm:$0xf]
          %v1793 = vunpack.c.l.b16 %v1777
          %v1794 = vunpack.c.l.b16 %v1778
          %v1795 = vunpack.c.l.b16 %v1779
          %v1796 = vunpack.c.l.b16 %v1780
          %v1797 = vunpack.c.l.b16 %v1781
          %v1798 = vunpack.c.l.b16 %v1782
          %v1799 = vunpack.c.l.b16 %v1783
          %v1800 = vunpack.c.l.b16 %v1784
          %v1801 = vpack.c.b16 %v1794, %v1793
          %v1802 = vpack.c.b16 %v1796, %v1795
          %v1803 = vpack.c.b16 %v1798, %v1797
          %v1804 = vpack.c.b16 %v1800, %v1799
          %v1806 = vsel %vm683, %v1776, 0
          %v1809 = vsel %vm683, %v1801, 0
          %v1812 = vsel %vm683, %v1802, 0
          %v1815 = vsel %vm683, %v1803, 0
          %v1818 = vsel %vm683, %v1804, 0
          %1820 = vmatprep.subr.bf16.mxu0 0
          %1821 = vmatpush1.bf16.xpose.msra.mxu0 %v1809
          %1822 = vmatprep.subr.bf16.mxu0 0
          %1823 = vmatpush1.bf16.xpose.msra.mxu0 %v1812
          %1824 = vmatprep.subr.bf16.mxu0 0
          %1825 = vmatpush1.bf16.xpose.msra.mxu0 %v1815
          %1826 = vmatprep.subr.bf16.mxu0 0
          %1827 = vmatpush1.bf16.xpose.msra.mxu0 %v1818
          %1828 = vmatprep.subr.bf16.mxu0 0
          %1829 = vmatpush1.bf16.xpose.msra.mxu0 0
          %1830 = vmatprep.subr.bf16.mxu0 0
          %1831 = vmatpush1.bf16.xpose.msra.mxu0 0
          %1832 = vmatprep.subr.bf16.mxu0 0
          %1833 = vmatpush1.bf16.xpose.msra.mxu0 0
          %1834 = vmatprep.subr.bf16.mxu0 0
          %1835 = vmatpush1.bf16.xpose.msra.mxu0 0
          %1836 = vmatprep.subr.bf16.mxu0 0
          %1837 = vmatpush1.bf16.xpose.msra.mxu0 0
          %1838 = vmatprep.subr.bf16.mxu0 0
          %1839 = vmatpush1.bf16.xpose.msra.mxu0 0
          %1840 = vmatprep.subr.bf16.mxu0 0
          %1841 = vmatpush1.bf16.xpose.msra.mxu0 0
          %1842 = vmatprep.subr.bf16.mxu0 0
          %1843 = vmatpush1.bf16.xpose.msra.mxu0 0
          %1844 = vmatprep.subr.bf16.mxu0 0
          %1845 = vmatpush1.bf16.xpose.msra.mxu0 0
          %1846 = vmatprep.subr.bf16.mxu0 0
          %1847 = vmatpush1.bf16.xpose.msra.mxu0 0
          %1848 = vmatprep.subr.bf16.mxu0 0
          %1849 = vmatpush1.bf16.xpose.msra.mxu0 0
          %1850 = vmatprep.subr.bf16.mxu0 0
          %1851 = vmatpush1.bf16.xpose.msra.mxu0 0
          %1852 = vmatprep.mubr.bf16.mxu0 0
          %1853 = vmatmul.mubr.bf16.gmra.mrb[0].mxu0 %v1806
          %v1854 = vpop.f32.mrb[0].mxu0
          %v1855 = vadd.f32 0.0, %v1854
          %v1856 = vpop.f32.mrb[0].mxu0
          %v1857 = vpop.f32.mrb[0].mxu0
          %v1858 = vpop.f32.mrb[0].mxu0
          %1859 = vdwg.mxu0
          %vm1860 = vcmask 523264
          %v1861 = vsel %vm1860, %v1855, -inf
          %1862 = vmax.xlane.f32.xlu0 %v1861
          %v1863 = vpop.xlane.xlu0 %1862
          %v1864 = vsub.f32 %v1855, %v1863
          %v1865 = vmul.f32 %v1864, 1.442695
          %v1866 = vpow.pop %v1865
          %v1867 = vsel %vm1860, %v1866, 0.0
          %1868 = vadd.xlane.f32.xlu0 %v1867
          %v1869 = vpop.xlane.xlu0 %1868
          %v1870 = vlog2.pop %v1869
          %v1871 = vmul.f32 %v1870, 0.6931472
          %v1872 = vsub.f32 %v1864, %v1871
          %v1873 = vld [vmem:[%s1] sm:$0xff]
          %1874 = vset.pattern.permute.xlu0 0
          %1875 = vperm.xlu0 %1874, %v1873
          %v1876 = vpop.permute.xlu0 %1875
          %vm1877 = vcmp.eq.s32.totalorder %v778, %v1876
          %v1878 = vsel %vm1877, 1, 0
          %v1879 = vcvt.s32.f32 %v1878
          %v1880 = vmul.f32 %v1879, %v1872
          %v1881 = vsel %vm1860, %v1880, 0.0
          %1882 = vadd.xlane.f32.xlu0 %v1881
          %v1883 = vpop.xlane.xlu0 %1882
          %v1884 = vsub.f32 0.0, %v1883
          %vm1885 = vcmp.ne.s32.totalorder %v1873, 4294967196
          %v1886 = vsel %vm1885, 1, 0
          %v1887 = vcvt.s32.f32 %v1886
          %v1888 = vmul.f32 %v1884, %v1887
          %vm1889 = vcmask 7168
          %v1890 = vsel %vm1889, %v1888, 0.0
          %v1891 = vrot.slane %v1890, 4
          %v1892 = vadd.f32 %v1890, %v1891
          %v1893 = vrot.slane %v1892, 2
          %v1894 = vadd.f32 %v1892, %v1893
          %v1895 = vrot.slane %v1894, 1
          %v1896 = vadd.f32 %v1894, %v1895
          %v1897 = vsel %vm1889, %v1887, 0.0
          %v1898 = vrot.slane %v1897, 4
          %v1899 = vadd.f32 %v1897, %v1898
          %v1900 = vrot.slane %v1899, 2
          %v1901 = vadd.f32 %v1899, %v1900
          %v1902 = vrot.slane %v1901, 1
          %v1903 = vadd.f32 %v1901, %v1902
          %v1904 = vmax.f32 %v1903, 1.0
          %v1905 = vrcp.pop %v1904
          %v1906 = vmul.f32 %v1896, %v1905
          %vm1907 = vcmask 0
          %1908 = vst.msk [vmem:[#allocation3] sm:$0x1] %vm1907, %v1906
        $region84: #{cag_gpt_forward_loss.1} parent=75 // pred_fallthru
          _
        // Predicated region
        $region85: #{cag_gpt_forward_loss.1} parent=75 // pred_check
          %p1909 = pneg %p378
        $region86: #{cag_gpt_forward_loss.1} parent=75 // pred_check_branch
          %1911 = sbr.rel (%p1909) target = $region88
        $region87: #{cag_gpt_forward_loss.1} parent=75 // pred_region
          %s1913 = ssub.s32 16, 16
          %1914 = vsyncadd [#allocation4], %s1913
          %s1916 = sshll.u32 [#allocation3], 4
          %s1917 = int_to_ptr.vmem [resolvable:$true] %s1916
          %1919 = dma.vmem_to_hbm [thread:$0]  %s1917, 16, %s14, [#allocation4]
        $region88: #{cag_gpt_forward_loss.1} parent=75 // pred_fallthru
          _
        // Predicated region
        $region89: #{cag_gpt_forward_loss.1} parent=75 // pred_check
          %p1920 = pneg %p378
        $region90: #{cag_gpt_forward_loss.1} parent=75 // pred_check_branch
          %1922 = sbr.rel (%p1920) target = $region92
        $region91: #{cag_gpt_forward_loss.1} parent=75 // pred_region
          %1923 = dma.done [#allocation4], 16
        $region92: #{cag_gpt_forward_loss.1} parent=75 // pred_fallthru
          _
      $region76: #{cag_gpt_forward_loss.1} parent=5 // pred_fallthru
        _
      %p1924 = scmp.le.s32.totalorder 2, %s21
      // Predicated region
      $region93: #{cag_gpt_forward_loss.1} parent=5 // pred_check
        %p1925 = pneg %p1924
      $region94: #{cag_gpt_forward_loss.1} parent=5 // pred_check_branch
        %1927 = sbr.rel (%p1925) target = $region96
      $region95: #{cag_gpt_forward_loss.1} parent=5 // pred_region
        %s1928 = ssub.s32 %s21, 2
      $region96: #{cag_gpt_forward_loss.1} parent=5 // pred_fallthru
        _
    $region6: #{cag_gpt_forward_loss.1} parent=1 // loop_footer
      %s25 = sadd.s32 1, %s21
    $region7: #{cag_gpt_forward_loss.1} parent=1 // loop_footer_branch
      %20 = sbr.rel target = $region3
    $region8: #{cag_gpt_forward_loss.1} parent=1 // loop_exit
      _
    %1929 = vsyncpa [#allocation4], 1
    %s1930 = scalar_lea.sflag [#allocation4], 1
    %1931 = vsyncpa %s1930, 1

</llo_original>
